<compile_context>
chip_gen: v7x
topology: tpu7x:2x2x1
jax: 0.10.0
libtpu: 0.0.40
codegen_flags: <defaults>
</compile_context>

<pallas_src>
import jax
import jax.numpy as jnp
from jax.experimental import pallas as pl
from jax.experimental.pallas import tpu as pltpu


def gru_bwd_fc_kernel(x_ref, h0_ref, wih_ref, whh_ref, bih_ref, bhh_ref,
                      wfc_ref, bfc_ref, out_ref, gi_sc):
    T, B, D = x_ref.shape
    H = h0_ref.shape[-1]

    # ---- Hoisted input projection: one big MXU matmul, off the serial chain.
    x_flat = x_ref[...].reshape(T * B, D)                       # (T*B, D)
    gi_all = jnp.dot(x_flat, wih_ref[...],
                     preferred_element_type=jnp.float32) + bih_ref[...]
    gi_sc[...] = gi_all.reshape(T, B, 3 * H)                    # (T, B, 3H)

    whh = whh_ref[...]                                          # (H, 3H)
    bhh = bhh_ref[...]                                          # (1, 3H)

    # ---- Time recurrence (input already time-reversed -> backward direction).
    def step(t, h_prev):
        gi = gi_sc[t]                                           # (B, 3H)
        gh = jnp.dot(h_prev, whh,
                     preferred_element_type=jnp.float32) + bhh  # (B, 3H)
        r = jax.nn.sigmoid(gi[:, 0 * H:1 * H] + gh[:, 0 * H:1 * H])
        z = jax.nn.sigmoid(gi[:, 1 * H:2 * H] + gh[:, 1 * H:2 * H])
        n = jnp.tanh(gi[:, 2 * H:3 * H] + r * gh[:, 2 * H:3 * H])
        return (1.0 - z) * n + z * h_prev

    h = jax.lax.fori_loop(0, T, step, h0_ref[...].astype(jnp.float32),
                          unroll=True)

    # ---- Fused classifier + log_softmax over the padded (lane-dense) width.
    #      Pad columns carry a -1e30 bias so they contribute 0 to the lse.
    logit = jnp.dot(h, wfc_ref[...],
                    preferred_element_type=jnp.float32) + bfc_ref[...]
    m = jnp.max(logit, axis=-1, keepdims=True)
    lse = m + jnp.log(jnp.sum(jnp.exp(logit - m), axis=-1, keepdims=True))
    out_ref[...] = (logit - lse).astype(out_ref.dtype)


def rnn_forward_pallas(x_emb_btd, h0_bwd, w_ih, w_hh, b_ih, b_hh, w_fc, b_fc):
    B, T, D = x_emb_btd.shape
    H = h0_bwd.shape[-1]
    C = w_fc.shape[0]
    C_pad = ((C + 127) // 128) * 128                 # lane-dense classifier width

    # Time-major + time-reversed: backward GRU direction drives h_n[-1].
    x_rev_tbd = jnp.transpose(x_emb_btd, (1, 0, 2))[::-1]       # (T, B, D)

    wih_t = w_ih.T                                   # (D, 3H), gate order [r, z, n]
    whh_t = w_hh.T                                   # (H, 3H)
    bih = b_ih.reshape(1, 3 * H)
    bhh = b_hh.reshape(1, 3 * H)

    wfc_pad = jnp.zeros((H, C_pad), jnp.float32).at[:, :C].set(w_fc.T)
    bfc_pad = jnp.full((1, C_pad), -1e30, jnp.float32).at[0, :C].set(b_fc)

    grid_spec = pltpu.PrefetchScalarGridSpec(
        num_scalar_prefetch=0,
        grid=(1,),                                   # single invocation, all in VMEM
        in_specs=[
            pl.BlockSpec((T, B, D), lambda i: (0, 0, 0)),
            pl.BlockSpec((B, H), lambda i: (0, 0)),
            pl.BlockSpec((D, 3 * H), lambda i: (0, 0)),
            pl.BlockSpec((H, 3 * H), lambda i: (0, 0)),
            pl.BlockSpec((1, 3 * H), lambda i: (0, 0)),
            pl.BlockSpec((1, 3 * H), lambda i: (0, 0)),
            pl.BlockSpec((H, C_pad), lambda i: (0, 0)),
            pl.BlockSpec((1, C_pad), lambda i: (0, 0)),
        ],
        out_specs=pl.BlockSpec((B, C_pad), lambda i: (0, 0)),
        scratch_shapes=[pltpu.VMEM((T, B, 3 * H), jnp.float32)],
    )

    out_pad = pl.pallas_call(
        gru_bwd_fc_kernel,
        out_shape=jax.ShapeDtypeStruct((B, C_pad), jnp.float32),
        grid_spec=grid_spec,
        compiler_params=pltpu.CompilerParams(dimension_semantics=("arbitrary",)),
    )(x_rev_tbd, h0_bwd, wih_t, whh_t, bih, bhh, wfc_pad, bfc_pad)

    return out_pad[:, :C]


def rnn_forward_ref(x_emb, h0_bwd, w_ih, w_hh, b_ih, b_hh, w_fc, b_fc):
    """Pure-JAX reference (PyTorch GRU semantics, backward direction only)."""
    H = h0_bwd.shape[-1]

    def step(h, x_t):
        gi = x_t @ w_ih.T + b_ih
        gh = h @ w_hh.T + b_hh
        r = jax.nn.sigmoid(gi[:, :H] + gh[:, :H])
        z = jax.nn.sigmoid(gi[:, H:2 * H] + gh[:, H:2 * H])
        n = jnp.tanh(gi[:, 2 * H:] + r * gh[:, 2 * H:])
        return (1.0 - z) * n + z * h, None

    x_rev = jnp.transpose(x_emb, (1, 0, 2))[::-1]    # (T, B, D), reversed
    h_final, _ = jax.lax.scan(step, h0_bwd, x_rev)
    logit = h_final @ w_fc.T + b_fc
    return jax.nn.log_softmax(logit, axis=-1)


if __name__ == "__main__":
    # Small shapes consistent with the module (hidden_size / seq_len shrunk).
    B, T = 2, 8
    VOCAB, D = 20, 128          # embedding_num n, embedding_dim d
    H, C = 128, 41              # hidden_size (small), num_classes = 41

    key = jax.random.PRNGKey(0)
    ks = jax.random.split(key, 10)
    scale = 1.0 / (H ** 0.5)

    emb_table = jax.random.normal(ks[0], (VOCAB, D), jnp.float32) * 0.1
    input_x = jax.random.randint(ks[1], (B, T), 0, VOCAB)
    w_ih = jax.random.uniform(ks[2], (3 * H, D), jnp.float32, -scale, scale)
    w_hh = jax.random.uniform(ks[3], (3 * H, H), jnp.float32, -scale, scale)
    b_ih = jax.random.uniform(ks[4], (3 * H,), jnp.float32, -scale, scale)
    b_hh = jax.random.uniform(ks[5], (3 * H,), jnp.float32, -scale, scale)
    w_fc = jax.random.uniform(ks[6], (C, H), jnp.float32, -scale, scale)
    b_fc = jax.random.uniform(ks[7], (C,), jnp.float32, -scale, scale)
    # torch.rand(num_layers*2, B, H) initial hidden; only direction 1 (backward) is used.
    h0 = jax.random.uniform(ks[8], (2, B, H), jnp.float32)

    x_emb = emb_table[input_x]          # embedding lookup (plain-JAX gather glue)
    h0_bwd = h0[1]                      # h_n[-1] depends only on the backward direction

    out = rnn_forward_pallas(x_emb, h0_bwd, w_ih, w_hh, b_ih, b_hh, w_fc, b_fc)
    out = jax.block_until_ready(out)

    ref = rnn_forward_ref(x_emb, h0_bwd, w_ih, w_hh, b_ih, b_hh, w_fc, b_fc)
    assert out.shape == (B, C)
    assert jnp.allclose(out, ref, atol=1e-4, rtol=1e-4), "mismatch vs JAX reference"
    print("KERNEL_OK")
</pallas_src>

<mosaic_0001>
module attributes {stable_mosaic.version = 11 : i64} {
  func.func @gru_bwd_fc_kernel(%arg0: i32, %arg1: memref<8x2x128xf32, #tpu.memory_space<vmem>>, %arg2: memref<2x128xf32, #tpu.memory_space<vmem>>, %arg3: memref<128x384xf32, #tpu.memory_space<vmem>>, %arg4: memref<128x384xf32, #tpu.memory_space<vmem>>, %arg5: memref<1x384xf32, #tpu.memory_space<vmem>>, %arg6: memref<1x384xf32, #tpu.memory_space<vmem>>, %arg7: memref<128x128xf32, #tpu.memory_space<vmem>>, %arg8: memref<1x128xf32, #tpu.memory_space<vmem>>, %arg9: memref<2x128xf32, #tpu.memory_space<vmem>>, %arg10: memref<8x2x384xf32, #tpu.memory_space<vmem>>) attributes {dimension_semantics = [#tpu.dimension_semantics<arbitrary>], iteration_bounds = array<i64: 1>, scalar_prefetch = 0 : i64, scratch_operands = 1 : i64, tpu.core_type = #tpu.core_type<tc>, window_params = [{pipeline_mode = #tpu.pipeline_mode<synchronous>, transform_indices = @transform_0, window_bounds = array<i64: 8, 2, 128>}, {pipeline_mode = #tpu.pipeline_mode<synchronous>, transform_indices = @transform_1, window_bounds = array<i64: 2, 128>}, {pipeline_mode = #tpu.pipeline_mode<synchronous>, transform_indices = @transform_2, window_bounds = array<i64: 128, 384>}, {pipeline_mode = #tpu.pipeline_mode<synchronous>, transform_indices = @transform_3, window_bounds = array<i64: 128, 384>}, {pipeline_mode = #tpu.pipeline_mode<synchronous>, transform_indices = @transform_4, window_bounds = array<i64: 1, 384>}, {pipeline_mode = #tpu.pipeline_mode<synchronous>, transform_indices = @transform_5, window_bounds = array<i64: 1, 384>}, {pipeline_mode = #tpu.pipeline_mode<synchronous>, transform_indices = @transform_6, window_bounds = array<i64: 128, 128>}, {pipeline_mode = #tpu.pipeline_mode<synchronous>, transform_indices = @transform_7, window_bounds = array<i64: 1, 128>}, {pipeline_mode = #tpu.pipeline_mode<synchronous>, transform_indices = @transform_8, window_bounds = array<i64: 2, 128>}]} {
    %c0 = arith.constant 0 : index
    %c0_0 = arith.constant 0 : index
    %c0_1 = arith.constant 0 : index
    %0 = vector.load %arg1[%c0, %c0_0, %c0_1] : memref<8x2x128xf32, #tpu.memory_space<vmem>>, vector<8x2x128xf32>
    %1 = vector.shape_cast %0 : vector<8x2x128xf32> to vector<16x128xf32>
    %c0_2 = arith.constant 0 : index
    %c0_3 = arith.constant 0 : index
    %2 = vector.load %arg3[%c0_2, %c0_3] : memref<128x384xf32, #tpu.memory_space<vmem>>, vector<128x384xf32>
    %cst = arith.constant dense<0.000000e+00> : vector<16x384xf32>
    %3 = tpu.matmul %1, %2, %cst {dimension_numbers = #tpu.dot_dimension_numbers<[1], [0], [0], [1], [0, 0, 1, 1], [], []>} : vector<16x128xf32>, vector<128x384xf32>, vector<16x384xf32> -> vector<16x384xf32>
    %c0_4 = arith.constant 0 : index
    %c0_5 = arith.constant 0 : index
    %4 = vector.load %arg5[%c0_4, %c0_5] : memref<1x384xf32, #tpu.memory_space<vmem>>, vector<1x384xf32>
    %5 = vector.broadcast %4 : vector<1x384xf32> to vector<16x384xf32>
    %6 = arith.addf %3, %5 : vector<16x384xf32>
    %7 = vector.shape_cast %6 : vector<16x384xf32> to vector<8x2x384xf32>
    %c0_6 = arith.constant 0 : index
    %c0_7 = arith.constant 0 : index
    %c0_8 = arith.constant 0 : index
    %8 = vector.load %arg10[%c0_6, %c0_7, %c0_8] : memref<8x2x384xf32, #tpu.memory_space<vmem>>, vector<8x2x384xf32>
    tpu.vector_store %arg10[%c0_6, %c0_7, %c0_8], %7 {strides = array<i32>} : memref<8x2x384xf32, #tpu.memory_space<vmem>>, vector<8x2x384xf32>,
    %c0_9 = arith.constant 0 : index
    %c0_10 = arith.constant 0 : index
    %9 = vector.load %arg4[%c0_9, %c0_10] : memref<128x384xf32, #tpu.memory_space<vmem>>, vector<128x384xf32>
    %c0_11 = arith.constant 0 : index
    %c0_12 = arith.constant 0 : index
    %10 = vector.load %arg6[%c0_11, %c0_12] : memref<1x384xf32, #tpu.memory_space<vmem>>, vector<1x384xf32>
    %c0_13 = arith.constant 0 : index
    %c0_14 = arith.constant 0 : index
    %11 = vector.load %arg2[%c0_13, %c0_14] : memref<2x128xf32, #tpu.memory_space<vmem>>, vector<2x128xf32>
    %c0_i32 = arith.constant 0 : i32
    %12 = arith.index_cast %c0_i32 : i32 to index
    %c0_15 = arith.constant 0 : index
    %c0_16 = arith.constant 0 : index
    %13 = vector.load %arg10[%12, %c0_15, %c0_16] : memref<8x2x384xf32, #tpu.memory_space<vmem>>, vector<1x2x384xf32>
    %14 = vector.shape_cast %13 : vector<1x2x384xf32> to vector<2x384xf32>
    %cst_17 = arith.constant dense<0.000000e+00> : vector<2x384xf32>
    %15 = tpu.matmul %11, %9, %cst_17 {dimension_numbers = #tpu.dot_dimension_numbers<[1], [0], [0], [1], [0, 0, 1, 1], [], []>} : vector<2x128xf32>, vector<128x384xf32>, vector<2x384xf32> -> vector<2x384xf32>
    %16 = vector.broadcast %10 : vector<1x384xf32> to vector<2x384xf32>
    %17 = arith.addf %15, %16 : vector<2x384xf32>
    %18 = vector.extract_strided_slice %14 {offsets = [0, 0], sizes = [2, 128], strides = [1, 1]} : vector<2x384xf32> to vector<2x128xf32>
    %19 = vector.extract_strided_slice %17 {offsets = [0, 0], sizes = [2, 128], strides = [1, 1]} : vector<2x384xf32> to vector<2x128xf32>
    %20 = arith.addf %18, %19 : vector<2x128xf32>
    %21 = arith.negf %20 : vector<2x128xf32>
    %22 = math.exp %21 : vector<2x128xf32>
    %cst_18 = arith.constant 1.000000e+00 : f32
    %23 = vector.broadcast %cst_18 : f32 to vector<2x128xf32>
    %24 = arith.addf %23, %22 : vector<2x128xf32>
    %25 = arith.divf %23, %24 : vector<2x128xf32>
    %26 = vector.extract_strided_slice %14 {offsets = [0, 128], sizes = [2, 128], strides = [1, 1]} : vector<2x384xf32> to vector<2x128xf32>
    %27 = vector.extract_strided_slice %17 {offsets = [0, 128], sizes = [2, 128], strides = [1, 1]} : vector<2x384xf32> to vector<2x128xf32>
    %28 = arith.addf %26, %27 : vector<2x128xf32>
    %29 = arith.negf %28 : vector<2x128xf32>
    %30 = math.exp %29 : vector<2x128xf32>
    %cst_19 = arith.constant 1.000000e+00 : f32
    %31 = vector.broadcast %cst_19 : f32 to vector<2x128xf32>
    %32 = arith.addf %31, %30 : vector<2x128xf32>
    %33 = arith.divf %31, %32 : vector<2x128xf32>
    %34 = vector.extract_strided_slice %14 {offsets = [0, 256], sizes = [2, 128], strides = [1, 1]} : vector<2x384xf32> to vector<2x128xf32>
    %35 = vector.extract_strided_slice %17 {offsets = [0, 256], sizes = [2, 128], strides = [1, 1]} : vector<2x384xf32> to vector<2x128xf32>
    %36 = arith.mulf %25, %35 : vector<2x128xf32>
    %37 = arith.addf %34, %36 : vector<2x128xf32>
    %38 = math.tanh %37 : vector<2x128xf32>
    %cst_20 = arith.constant 1.000000e+00 : f32
    %39 = vector.broadcast %cst_20 : f32 to vector<2x128xf32>
    %40 = arith.subf %39, %33 : vector<2x128xf32>
    %41 = arith.mulf %40, %38 : vector<2x128xf32>
    %42 = arith.mulf %33, %11 : vector<2x128xf32>
    %43 = arith.addf %41, %42 : vector<2x128xf32>
    %c1_i32 = arith.constant 1 : i32
    %44 = arith.index_cast %c1_i32 : i32 to index
    %c0_21 = arith.constant 0 : index
    %c0_22 = arith.constant 0 : index
    %45 = vector.load %arg10[%44, %c0_21, %c0_22] : memref<8x2x384xf32, #tpu.memory_space<vmem>>, vector<1x2x384xf32>
    %46 = vector.shape_cast %45 : vector<1x2x384xf32> to vector<2x384xf32>
    %cst_23 = arith.constant dense<0.000000e+00> : vector<2x384xf32>
    %47 = tpu.matmul %43, %9, %cst_23 {dimension_numbers = #tpu.dot_dimension_numbers<[1], [0], [0], [1], [0, 0, 1, 1], [], []>} : vector<2x128xf32>, vector<128x384xf32>, vector<2x384xf32> -> vector<2x384xf32>
    %48 = vector.broadcast %10 : vector<1x384xf32> to vector<2x384xf32>
    %49 = arith.addf %47, %48 : vector<2x384xf32>
    %50 = vector.extract_strided_slice %46 {offsets = [0, 0], sizes = [2, 128], strides = [1, 1]} : vector<2x384xf32> to vector<2x128xf32>
    %51 = vector.extract_strided_slice %49 {offsets = [0, 0], sizes = [2, 128], strides = [1, 1]} : vector<2x384xf32> to vector<2x128xf32>
    %52 = arith.addf %50, %51 : vector<2x128xf32>
    %53 = arith.negf %52 : vector<2x128xf32>
    %54 = math.exp %53 : vector<2x128xf32>
    %cst_24 = arith.constant 1.000000e+00 : f32
    %55 = vector.broadcast %cst_24 : f32 to vector<2x128xf32>
    %56 = arith.addf %55, %54 : vector<2x128xf32>
    %57 = arith.divf %55, %56 : vector<2x128xf32>
    %58 = vector.extract_strided_slice %46 {offsets = [0, 128], sizes = [2, 128], strides = [1, 1]} : vector<2x384xf32> to vector<2x128xf32>
    %59 = vector.extract_strided_slice %49 {offsets = [0, 128], sizes = [2, 128], strides = [1, 1]} : vector<2x384xf32> to vector<2x128xf32>
    %60 = arith.addf %58, %59 : vector<2x128xf32>
    %61 = arith.negf %60 : vector<2x128xf32>
    %62 = math.exp %61 : vector<2x128xf32>
    %cst_25 = arith.constant 1.000000e+00 : f32
    %63 = vector.broadcast %cst_25 : f32 to vector<2x128xf32>
    %64 = arith.addf %63, %62 : vector<2x128xf32>
    %65 = arith.divf %63, %64 : vector<2x128xf32>
    %66 = vector.extract_strided_slice %46 {offsets = [0, 256], sizes = [2, 128], strides = [1, 1]} : vector<2x384xf32> to vector<2x128xf32>
    %67 = vector.extract_strided_slice %49 {offsets = [0, 256], sizes = [2, 128], strides = [1, 1]} : vector<2x384xf32> to vector<2x128xf32>
    %68 = arith.mulf %57, %67 : vector<2x128xf32>
    %69 = arith.addf %66, %68 : vector<2x128xf32>
    %70 = math.tanh %69 : vector<2x128xf32>
    %cst_26 = arith.constant 1.000000e+00 : f32
    %71 = vector.broadcast %cst_26 : f32 to vector<2x128xf32>
    %72 = arith.subf %71, %65 : vector<2x128xf32>
    %73 = arith.mulf %72, %70 : vector<2x128xf32>
    %74 = arith.mulf %65, %43 : vector<2x128xf32>
    %75 = arith.addf %73, %74 : vector<2x128xf32>
    %c2_i32 = arith.constant 2 : i32
    %76 = arith.index_cast %c2_i32 : i32 to index
    %c0_27 = arith.constant 0 : index
    %c0_28 = arith.constant 0 : index
    %77 = vector.load %arg10[%76, %c0_27, %c0_28] : memref<8x2x384xf32, #tpu.memory_space<vmem>>, vector<1x2x384xf32>
    %78 = vector.shape_cast %77 : vector<1x2x384xf32> to vector<2x384xf32>
    %cst_29 = arith.constant dense<0.000000e+00> : vector<2x384xf32>
    %79 = tpu.matmul %75, %9, %cst_29 {dimension_numbers = #tpu.dot_dimension_numbers<[1], [0], [0], [1], [0, 0, 1, 1], [], []>} : vector<2x128xf32>, vector<128x384xf32>, vector<2x384xf32> -> vector<2x384xf32>
    %80 = vector.broadcast %10 : vector<1x384xf32> to vector<2x384xf32>
    %81 = arith.addf %79, %80 : vector<2x384xf32>
    %82 = vector.extract_strided_slice %78 {offsets = [0, 0], sizes = [2, 128], strides = [1, 1]} : vector<2x384xf32> to vector<2x128xf32>
    %83 = vector.extract_strided_slice %81 {offsets = [0, 0], sizes = [2, 128], strides = [1, 1]} : vector<2x384xf32> to vector<2x128xf32>
    %84 = arith.addf %82, %83 : vector<2x128xf32>
    %85 = arith.negf %84 : vector<2x128xf32>
    %86 = math.exp %85 : vector<2x128xf32>
    %cst_30 = arith.constant 1.000000e+00 : f32
    %87 = vector.broadcast %cst_30 : f32 to vector<2x128xf32>
    %88 = arith.addf %87, %86 : vector<2x128xf32>
    %89 = arith.divf %87, %88 : vector<2x128xf32>
    %90 = vector.extract_strided_slice %78 {offsets = [0, 128], sizes = [2, 128], strides = [1, 1]} : vector<2x384xf32> to vector<2x128xf32>
    %91 = vector.extract_strided_slice %81 {offsets = [0, 128], sizes = [2, 128], strides = [1, 1]} : vector<2x384xf32> to vector<2x128xf32>
    %92 = arith.addf %90, %91 : vector<2x128xf32>
    %93 = arith.negf %92 : vector<2x128xf32>
    %94 = math.exp %93 : vector<2x128xf32>
    %cst_31 = arith.constant 1.000000e+00 : f32
    %95 = vector.broadcast %cst_31 : f32 to vector<2x128xf32>
    %96 = arith.addf %95, %94 : vector<2x128xf32>
    %97 = arith.divf %95, %96 : vector<2x128xf32>
    %98 = vector.extract_strided_slice %78 {offsets = [0, 256], sizes = [2, 128], strides = [1, 1]} : vector<2x384xf32> to vector<2x128xf32>
    %99 = vector.extract_strided_slice %81 {offsets = [0, 256], sizes = [2, 128], strides = [1, 1]} : vector<2x384xf32> to vector<2x128xf32>
    %100 = arith.mulf %89, %99 : vector<2x128xf32>
    %101 = arith.addf %98, %100 : vector<2x128xf32>
    %102 = math.tanh %101 : vector<2x128xf32>
    %cst_32 = arith.constant 1.000000e+00 : f32
    %103 = vector.broadcast %cst_32 : f32 to vector<2x128xf32>
    %104 = arith.subf %103, %97 : vector<2x128xf32>
    %105 = arith.mulf %104, %102 : vector<2x128xf32>
    %106 = arith.mulf %97, %75 : vector<2x128xf32>
    %107 = arith.addf %105, %106 : vector<2x128xf32>
    %c3_i32 = arith.constant 3 : i32
    %108 = arith.index_cast %c3_i32 : i32 to index
    %c0_33 = arith.constant 0 : index
    %c0_34 = arith.constant 0 : index
    %109 = vector.load %arg10[%108, %c0_33, %c0_34] : memref<8x2x384xf32, #tpu.memory_space<vmem>>, vector<1x2x384xf32>
    %110 = vector.shape_cast %109 : vector<1x2x384xf32> to vector<2x384xf32>
    %cst_35 = arith.constant dense<0.000000e+00> : vector<2x384xf32>
    %111 = tpu.matmul %107, %9, %cst_35 {dimension_numbers = #tpu.dot_dimension_numbers<[1], [0], [0], [1], [0, 0, 1, 1], [], []>} : vector<2x128xf32>, vector<128x384xf32>, vector<2x384xf32> -> vector<2x384xf32>
    %112 = vector.broadcast %10 : vector<1x384xf32> to vector<2x384xf32>
    %113 = arith.addf %111, %112 : vector<2x384xf32>
    %114 = vector.extract_strided_slice %110 {offsets = [0, 0], sizes = [2, 128], strides = [1, 1]} : vector<2x384xf32> to vector<2x128xf32>
    %115 = vector.extract_strided_slice %113 {offsets = [0, 0], sizes = [2, 128], strides = [1, 1]} : vector<2x384xf32> to vector<2x128xf32>
    %116 = arith.addf %114, %115 : vector<2x128xf32>
    %117 = arith.negf %116 : vector<2x128xf32>
    %118 = math.exp %117 : vector<2x128xf32>
    %cst_36 = arith.constant 1.000000e+00 : f32
    %119 = vector.broadcast %cst_36 : f32 to vector<2x128xf32>
    %120 = arith.addf %119, %118 : vector<2x128xf32>
    %121 = arith.divf %119, %120 : vector<2x128xf32>
    %122 = vector.extract_strided_slice %110 {offsets = [0, 128], sizes = [2, 128], strides = [1, 1]} : vector<2x384xf32> to vector<2x128xf32>
    %123 = vector.extract_strided_slice %113 {offsets = [0, 128], sizes = [2, 128], strides = [1, 1]} : vector<2x384xf32> to vector<2x128xf32>
    %124 = arith.addf %122, %123 : vector<2x128xf32>
    %125 = arith.negf %124 : vector<2x128xf32>
    %126 = math.exp %125 : vector<2x128xf32>
    %cst_37 = arith.constant 1.000000e+00 : f32
    %127 = vector.broadcast %cst_37 : f32 to vector<2x128xf32>
    %128 = arith.addf %127, %126 : vector<2x128xf32>
    %129 = arith.divf %127, %128 : vector<2x128xf32>
    %130 = vector.extract_strided_slice %110 {offsets = [0, 256], sizes = [2, 128], strides = [1, 1]} : vector<2x384xf32> to vector<2x128xf32>
    %131 = vector.extract_strided_slice %113 {offsets = [0, 256], sizes = [2, 128], strides = [1, 1]} : vector<2x384xf32> to vector<2x128xf32>
    %132 = arith.mulf %121, %131 : vector<2x128xf32>
    %133 = arith.addf %130, %132 : vector<2x128xf32>
    %134 = math.tanh %133 : vector<2x128xf32>
    %cst_38 = arith.constant 1.000000e+00 : f32
    %135 = vector.broadcast %cst_38 : f32 to vector<2x128xf32>
    %136 = arith.subf %135, %129 : vector<2x128xf32>
    %137 = arith.mulf %136, %134 : vector<2x128xf32>
    %138 = arith.mulf %129, %107 : vector<2x128xf32>
    %139 = arith.addf %137, %138 : vector<2x128xf32>
    %c4_i32 = arith.constant 4 : i32
    %140 = arith.index_cast %c4_i32 : i32 to index
    %c0_39 = arith.constant 0 : index
    %c0_40 = arith.constant 0 : index
    %141 = vector.load %arg10[%140, %c0_39, %c0_40] : memref<8x2x384xf32, #tpu.memory_space<vmem>>, vector<1x2x384xf32>
    %142 = vector.shape_cast %141 : vector<1x2x384xf32> to vector<2x384xf32>
    %cst_41 = arith.constant dense<0.000000e+00> : vector<2x384xf32>
    %143 = tpu.matmul %139, %9, %cst_41 {dimension_numbers = #tpu.dot_dimension_numbers<[1], [0], [0], [1], [0, 0, 1, 1], [], []>} : vector<2x128xf32>, vector<128x384xf32>, vector<2x384xf32> -> vector<2x384xf32>
    %144 = vector.broadcast %10 : vector<1x384xf32> to vector<2x384xf32>
    %145 = arith.addf %143, %144 : vector<2x384xf32>
    %146 = vector.extract_strided_slice %142 {offsets = [0, 0], sizes = [2, 128], strides = [1, 1]} : vector<2x384xf32> to vector<2x128xf32>
    %147 = vector.extract_strided_slice %145 {offsets = [0, 0], sizes = [2, 128], strides = [1, 1]} : vector<2x384xf32> to vector<2x128xf32>
    %148 = arith.addf %146, %147 : vector<2x128xf32>
    %149 = arith.negf %148 : vector<2x128xf32>
    %150 = math.exp %149 : vector<2x128xf32>
    %cst_42 = arith.constant 1.000000e+00 : f32
    %151 = vector.broadcast %cst_42 : f32 to vector<2x128xf32>
    %152 = arith.addf %151, %150 : vector<2x128xf32>
    %153 = arith.divf %151, %152 : vector<2x128xf32>
    %154 = vector.extract_strided_slice %142 {offsets = [0, 128], sizes = [2, 128], strides = [1, 1]} : vector<2x384xf32> to vector<2x128xf32>
    %155 = vector.extract_strided_slice %145 {offsets = [0, 128], sizes = [2, 128], strides = [1, 1]} : vector<2x384xf32> to vector<2x128xf32>
    %156 = arith.addf %154, %155 : vector<2x128xf32>
    %157 = arith.negf %156 : vector<2x128xf32>
    %158 = math.exp %157 : vector<2x128xf32>
    %cst_43 = arith.constant 1.000000e+00 : f32
    %159 = vector.broadcast %cst_43 : f32 to vector<2x128xf32>
    %160 = arith.addf %159, %158 : vector<2x128xf32>
    %161 = arith.divf %159, %160 : vector<2x128xf32>
    %162 = vector.extract_strided_slice %142 {offsets = [0, 256], sizes = [2, 128], strides = [1, 1]} : vector<2x384xf32> to vector<2x128xf32>
    %163 = vector.extract_strided_slice %145 {offsets = [0, 256], sizes = [2, 128], strides = [1, 1]} : vector<2x384xf32> to vector<2x128xf32>
    %164 = arith.mulf %153, %163 : vector<2x128xf32>
    %165 = arith.addf %162, %164 : vector<2x128xf32>
    %166 = math.tanh %165 : vector<2x128xf32>
    %cst_44 = arith.constant 1.000000e+00 : f32
    %167 = vector.broadcast %cst_44 : f32 to vector<2x128xf32>
    %168 = arith.subf %167, %161 : vector<2x128xf32>
    %169 = arith.mulf %168, %166 : vector<2x128xf32>
    %170 = arith.mulf %161, %139 : vector<2x128xf32>
    %171 = arith.addf %169, %170 : vector<2x128xf32>
    %c5_i32 = arith.constant 5 : i32
    %172 = arith.index_cast %c5_i32 : i32 to index
    %c0_45 = arith.constant 0 : index
    %c0_46 = arith.constant 0 : index
    %173 = vector.load %arg10[%172, %c0_45, %c0_46] : memref<8x2x384xf32, #tpu.memory_space<vmem>>, vector<1x2x384xf32>
    %174 = vector.shape_cast %173 : vector<1x2x384xf32> to vector<2x384xf32>
    %cst_47 = arith.constant dense<0.000000e+00> : vector<2x384xf32>
    %175 = tpu.matmul %171, %9, %cst_47 {dimension_numbers = #tpu.dot_dimension_numbers<[1], [0], [0], [1], [0, 0, 1, 1], [], []>} : vector<2x128xf32>, vector<128x384xf32>, vector<2x384xf32> -> vector<2x384xf32>
    %176 = vector.broadcast %10 : vector<1x384xf32> to vector<2x384xf32>
    %177 = arith.addf %175, %176 : vector<2x384xf32>
    %178 = vector.extract_strided_slice %174 {offsets = [0, 0], sizes = [2, 128], strides = [1, 1]} : vector<2x384xf32> to vector<2x128xf32>
    %179 = vector.extract_strided_slice %177 {offsets = [0, 0], sizes = [2, 128], strides = [1, 1]} : vector<2x384xf32> to vector<2x128xf32>
    %180 = arith.addf %178, %179 : vector<2x128xf32>
    %181 = arith.negf %180 : vector<2x128xf32>
    %182 = math.exp %181 : vector<2x128xf32>
    %cst_48 = arith.constant 1.000000e+00 : f32
    %183 = vector.broadcast %cst_48 : f32 to vector<2x128xf32>
    %184 = arith.addf %183, %182 : vector<2x128xf32>
    %185 = arith.divf %183, %184 : vector<2x128xf32>
    %186 = vector.extract_strided_slice %174 {offsets = [0, 128], sizes = [2, 128], strides = [1, 1]} : vector<2x384xf32> to vector<2x128xf32>
    %187 = vector.extract_strided_slice %177 {offsets = [0, 128], sizes = [2, 128], strides = [1, 1]} : vector<2x384xf32> to vector<2x128xf32>
    %188 = arith.addf %186, %187 : vector<2x128xf32>
    %189 = arith.negf %188 : vector<2x128xf32>
    %190 = math.exp %189 : vector<2x128xf32>
    %cst_49 = arith.constant 1.000000e+00 : f32
    %191 = vector.broadcast %cst_49 : f32 to vector<2x128xf32>
    %192 = arith.addf %191, %190 : vector<2x128xf32>
    %193 = arith.divf %191, %192 : vector<2x128xf32>
    %194 = vector.extract_strided_slice %174 {offsets = [0, 256], sizes = [2, 128], strides = [1, 1]} : vector<2x384xf32> to vector<2x128xf32>
    %195 = vector.extract_strided_slice %177 {offsets = [0, 256], sizes = [2, 128], strides = [1, 1]} : vector<2x384xf32> to vector<2x128xf32>
    %196 = arith.mulf %185, %195 : vector<2x128xf32>
    %197 = arith.addf %194, %196 : vector<2x128xf32>
    %198 = math.tanh %197 : vector<2x128xf32>
    %cst_50 = arith.constant 1.000000e+00 : f32
    %199 = vector.broadcast %cst_50 : f32 to vector<2x128xf32>
    %200 = arith.subf %199, %193 : vector<2x128xf32>
    %201 = arith.mulf %200, %198 : vector<2x128xf32>
    %202 = arith.mulf %193, %171 : vector<2x128xf32>
    %203 = arith.addf %201, %202 : vector<2x128xf32>
    %c6_i32 = arith.constant 6 : i32
    %204 = arith.index_cast %c6_i32 : i32 to index
    %c0_51 = arith.constant 0 : index
    %c0_52 = arith.constant 0 : index
    %205 = vector.load %arg10[%204, %c0_51, %c0_52] : memref<8x2x384xf32, #tpu.memory_space<vmem>>, vector<1x2x384xf32>
    %206 = vector.shape_cast %205 : vector<1x2x384xf32> to vector<2x384xf32>
    %cst_53 = arith.constant dense<0.000000e+00> : vector<2x384xf32>
    %207 = tpu.matmul %203, %9, %cst_53 {dimension_numbers = #tpu.dot_dimension_numbers<[1], [0], [0], [1], [0, 0, 1, 1], [], []>} : vector<2x128xf32>, vector<128x384xf32>, vector<2x384xf32> -> vector<2x384xf32>
    %208 = vector.broadcast %10 : vector<1x384xf32> to vector<2x384xf32>
    %209 = arith.addf %207, %208 : vector<2x384xf32>
    %210 = vector.extract_strided_slice %206 {offsets = [0, 0], sizes = [2, 128], strides = [1, 1]} : vector<2x384xf32> to vector<2x128xf32>
    %211 = vector.extract_strided_slice %209 {offsets = [0, 0], sizes = [2, 128], strides = [1, 1]} : vector<2x384xf32> to vector<2x128xf32>
    %212 = arith.addf %210, %211 : vector<2x128xf32>
    %213 = arith.negf %212 : vector<2x128xf32>
    %214 = math.exp %213 : vector<2x128xf32>
    %cst_54 = arith.constant 1.000000e+00 : f32
    %215 = vector.broadcast %cst_54 : f32 to vector<2x128xf32>
    %216 = arith.addf %215, %214 : vector<2x128xf32>
    %217 = arith.divf %215, %216 : vector<2x128xf32>
    %218 = vector.extract_strided_slice %206 {offsets = [0, 128], sizes = [2, 128], strides = [1, 1]} : vector<2x384xf32> to vector<2x128xf32>
    %219 = vector.extract_strided_slice %209 {offsets = [0, 128], sizes = [2, 128], strides = [1, 1]} : vector<2x384xf32> to vector<2x128xf32>
    %220 = arith.addf %218, %219 : vector<2x128xf32>
    %221 = arith.negf %220 : vector<2x128xf32>
    %222 = math.exp %221 : vector<2x128xf32>
    %cst_55 = arith.constant 1.000000e+00 : f32
    %223 = vector.broadcast %cst_55 : f32 to vector<2x128xf32>
    %224 = arith.addf %223, %222 : vector<2x128xf32>
    %225 = arith.divf %223, %224 : vector<2x128xf32>
    %226 = vector.extract_strided_slice %206 {offsets = [0, 256], sizes = [2, 128], strides = [1, 1]} : vector<2x384xf32> to vector<2x128xf32>
    %227 = vector.extract_strided_slice %209 {offsets = [0, 256], sizes = [2, 128], strides = [1, 1]} : vector<2x384xf32> to vector<2x128xf32>
    %228 = arith.mulf %217, %227 : vector<2x128xf32>
    %229 = arith.addf %226, %228 : vector<2x128xf32>
    %230 = math.tanh %229 : vector<2x128xf32>
    %cst_56 = arith.constant 1.000000e+00 : f32
    %231 = vector.broadcast %cst_56 : f32 to vector<2x128xf32>
    %232 = arith.subf %231, %225 : vector<2x128xf32>
    %233 = arith.mulf %232, %230 : vector<2x128xf32>
    %234 = arith.mulf %225, %203 : vector<2x128xf32>
    %235 = arith.addf %233, %234 : vector<2x128xf32>
    %c7_i32 = arith.constant 7 : i32
    %236 = arith.index_cast %c7_i32 : i32 to index
    %c0_57 = arith.constant 0 : index
    %c0_58 = arith.constant 0 : index
    %237 = vector.load %arg10[%236, %c0_57, %c0_58] : memref<8x2x384xf32, #tpu.memory_space<vmem>>, vector<1x2x384xf32>
    %238 = vector.shape_cast %237 : vector<1x2x384xf32> to vector<2x384xf32>
    %cst_59 = arith.constant dense<0.000000e+00> : vector<2x384xf32>
    %239 = tpu.matmul %235, %9, %cst_59 {dimension_numbers = #tpu.dot_dimension_numbers<[1], [0], [0], [1], [0, 0, 1, 1], [], []>} : vector<2x128xf32>, vector<128x384xf32>, vector<2x384xf32> -> vector<2x384xf32>
    %240 = vector.broadcast %10 : vector<1x384xf32> to vector<2x384xf32>
    %241 = arith.addf %239, %240 : vector<2x384xf32>
    %242 = vector.extract_strided_slice %238 {offsets = [0, 0], sizes = [2, 128], strides = [1, 1]} : vector<2x384xf32> to vector<2x128xf32>
    %243 = vector.extract_strided_slice %241 {offsets = [0, 0], sizes = [2, 128], strides = [1, 1]} : vector<2x384xf32> to vector<2x128xf32>
    %244 = arith.addf %242, %243 : vector<2x128xf32>
    %245 = arith.negf %244 : vector<2x128xf32>
    %246 = math.exp %245 : vector<2x128xf32>
    %cst_60 = arith.constant 1.000000e+00 : f32
    %247 = vector.broadcast %cst_60 : f32 to vector<2x128xf32>
    %248 = arith.addf %247, %246 : vector<2x128xf32>
    %249 = arith.divf %247, %248 : vector<2x128xf32>
    %250 = vector.extract_strided_slice %238 {offsets = [0, 128], sizes = [2, 128], strides = [1, 1]} : vector<2x384xf32> to vector<2x128xf32>
    %251 = vector.extract_strided_slice %241 {offsets = [0, 128], sizes = [2, 128], strides = [1, 1]} : vector<2x384xf32> to vector<2x128xf32>
    %252 = arith.addf %250, %251 : vector<2x128xf32>
    %253 = arith.negf %252 : vector<2x128xf32>
    %254 = math.exp %253 : vector<2x128xf32>
    %cst_61 = arith.constant 1.000000e+00 : f32
    %255 = vector.broadcast %cst_61 : f32 to vector<2x128xf32>
    %256 = arith.addf %255, %254 : vector<2x128xf32>
    %257 = arith.divf %255, %256 : vector<2x128xf32>
    %258 = vector.extract_strided_slice %238 {offsets = [0, 256], sizes = [2, 128], strides = [1, 1]} : vector<2x384xf32> to vector<2x128xf32>
    %259 = vector.extract_strided_slice %241 {offsets = [0, 256], sizes = [2, 128], strides = [1, 1]} : vector<2x384xf32> to vector<2x128xf32>
    %260 = arith.mulf %249, %259 : vector<2x128xf32>
    %261 = arith.addf %258, %260 : vector<2x128xf32>
    %262 = math.tanh %261 : vector<2x128xf32>
    %cst_62 = arith.constant 1.000000e+00 : f32
    %263 = vector.broadcast %cst_62 : f32 to vector<2x128xf32>
    %264 = arith.subf %263, %257 : vector<2x128xf32>
    %265 = arith.mulf %264, %262 : vector<2x128xf32>
    %266 = arith.mulf %257, %235 : vector<2x128xf32>
    %267 = arith.addf %265, %266 : vector<2x128xf32>
    %c8_i32 = arith.constant 8 : i32
    %c0_63 = arith.constant 0 : index
    %c0_64 = arith.constant 0 : index
    %268 = vector.load %arg7[%c0_63, %c0_64] : memref<128x128xf32, #tpu.memory_space<vmem>>, vector<128x128xf32>
    %cst_65 = arith.constant dense<0.000000e+00> : vector<2x128xf32>
    %269 = tpu.matmul %267, %268, %cst_65 {dimension_numbers = #tpu.dot_dimension_numbers<[1], [0], [0], [1], [0, 0, 1, 1], [], []>} : vector<2x128xf32>, vector<128x128xf32>, vector<2x128xf32> -> vector<2x128xf32>
    %c0_66 = arith.constant 0 : index
    %c0_67 = arith.constant 0 : index
    %270 = vector.load %arg8[%c0_66, %c0_67] : memref<1x128xf32, #tpu.memory_space<vmem>>, vector<1x128xf32>
    %271 = vector.broadcast %270 : vector<1x128xf32> to vector<2x128xf32>
    %272 = arith.addf %269, %271 : vector<2x128xf32>
    %cst_68 = arith.constant dense<0xFF800000> : vector<2xf32>
    %273 = vector.multi_reduction <maximumf>, %272, %cst_68 [1] : vector<2x128xf32> to vector<2xf32>
    %274 = vector.shape_cast %273 : vector<2xf32> to vector<2x1xf32>
    %275 = vector.broadcast %274 : vector<2x1xf32> to vector<2x128xf32>
    %276 = arith.subf %272, %275 : vector<2x128xf32>
    %277 = math.exp %276 : vector<2x128xf32>
    %cst_69 = arith.constant dense<0.000000e+00> : vector<2xf32>
    %278 = vector.multi_reduction <add>, %277, %cst_69 [1] : vector<2x128xf32> to vector<2xf32>
    %279 = vector.shape_cast %278 : vector<2xf32> to vector<2x1xf32>
    %280 = math.log %279 : vector<2x1xf32>
    %281 = arith.addf %274, %280 : vector<2x1xf32>
    %282 = vector.broadcast %281 : vector<2x1xf32> to vector<2x128xf32>
    %283 = arith.subf %272, %282 : vector<2x128xf32>
    %c0_70 = arith.constant 0 : index
    %c0_71 = arith.constant 0 : index
    %284 = vector.load %arg9[%c0_70, %c0_71] : memref<2x128xf32, #tpu.memory_space<vmem>>, vector<2x128xf32>
    tpu.vector_store %arg9[%c0_70, %c0_71], %283 {strides = array<i32>} : memref<2x128xf32, #tpu.memory_space<vmem>>, vector<2x128xf32>,
    return
  }
  func.func @transform_0(%arg0: i32) -> (i32, i32, i32) {
    %c0_i32 = arith.constant 0 : i32
    %c0_i32_0 = arith.constant 0 : i32
    %c0_i32_1 = arith.constant 0 : i32
    %c0_i32_2 = arith.constant 0 : i32
    return %c0_i32, %c0_i32_0, %c0_i32_1 : i32, i32, i32
  }
  func.func @transform_1(%arg0: i32) -> (i32, i32) {
    %c0_i32 = arith.constant 0 : i32
    %c0_i32_0 = arith.constant 0 : i32
    %c0_i32_1 = arith.constant 0 : i32
    return %c0_i32, %c0_i32_0 : i32, i32
  }
  func.func @transform_2(%arg0: i32) -> (i32, i32) {
    %c0_i32 = arith.constant 0 : i32
    %c0_i32_0 = arith.constant 0 : i32
    %c0_i32_1 = arith.constant 0 : i32
    return %c0_i32, %c0_i32_0 : i32, i32
  }
  func.func @transform_3(%arg0: i32) -> (i32, i32) {
    %c0_i32 = arith.constant 0 : i32
    %c0_i32_0 = arith.constant 0 : i32
    %c0_i32_1 = arith.constant 0 : i32
    return %c0_i32, %c0_i32_0 : i32, i32
  }
  func.func @transform_4(%arg0: i32) -> (i32, i32) {
    %c0_i32 = arith.constant 0 : i32
    %c0_i32_0 = arith.constant 0 : i32
    %c0_i32_1 = arith.constant 0 : i32
    return %c0_i32, %c0_i32_0 : i32, i32
  }
  func.func @transform_5(%arg0: i32) -> (i32, i32) {
    %c0_i32 = arith.constant 0 : i32
    %c0_i32_0 = arith.constant 0 : i32
    %c0_i32_1 = arith.constant 0 : i32
    return %c0_i32, %c0_i32_0 : i32, i32
  }
  func.func @transform_6(%arg0: i32) -> (i32, i32) {
    %c0_i32 = arith.constant 0 : i32
    %c0_i32_0 = arith.constant 0 : i32
    %c0_i32_1 = arith.constant 0 : i32
    return %c0_i32, %c0_i32_0 : i32, i32
  }
  func.func @transform_7(%arg0: i32) -> (i32, i32) {
    %c0_i32 = arith.constant 0 : i32
    %c0_i32_0 = arith.constant 0 : i32
    %c0_i32_1 = arith.constant 0 : i32
    return %c0_i32, %c0_i32_0 : i32, i32
  }
  func.func @transform_8(%arg0: i32) -> (i32, i32) {
    %c0_i32 = arith.constant 0 : i32
    %c0_i32_0 = arith.constant 0 : i32
    %c0_i32_1 = arith.constant 0 : i32
    return %c0_i32, %c0_i32_0 : i32, i32
  }
}

</mosaic_0001>

<llo_original>
// kernel: tpu_custom_call.1
$region0: #{tpu_custom_call.1}
  #allocation0 [shape = 'u32[]', space=smem, size = 0x4, offset = 0x4, fixed_abs, tag = 'smem constant byte address 0x4 - core index']
  #allocation1 [shape = 'u32[144,128]{1,0:T(1,128)}', space=vmem, size = 0x12000, scoped, tag = 'internal scratch']
  #allocation2 [shape = 'f32[8,2,384]{2,1,0:T(2,128)}', space=vmem, size = 0x6000, scoped, tag = 'scratch operand']
  %s0 = inlined_call_operand.hbm [shape: f32[8,2,128], index: 0, kind: input, shape index: {}]
  %s1 = inlined_call_operand.hbm [shape: f32[2,128], index: 1, kind: input, shape index: {}]
  %s2 = inlined_call_operand.hbm [shape: f32[128,384], index: 2, kind: input, shape index: {}]
  %s3 = inlined_call_operand.hbm [shape: f32[128,384], index: 3, kind: input, shape index: {}]
  %s4 = inlined_call_operand.vmem [shape: f32[1,384], index: 4, kind: input, shape index: {}]
  %s5 = inlined_call_operand.vmem [shape: f32[1,384], index: 5, kind: input, shape index: {}]
  %s6 = inlined_call_operand.hbm [shape: f32[128,128], index: 6, kind: input, shape index: {}]
  %s7 = inlined_call_operand.vmem [shape: f32[1,128], index: 7, kind: input, shape index: {}]
  %s8 = inlined_call_operand.hbm [shape: f32[2,128], index: 8, kind: output, shape index: {}]
  %s9 = sld [smem:[#allocation0]]
  $region62: #{tpu_custom_call.1} parent=0
    _
  %s11 = ssub.s32 1, %s9
  %s12 = scalar_select 0, %s11, %s9
  $region1: #{tpu_custom_call.1} parent=0
    #allocation3 [shape = 'u8[8192]{0}', space=vmem, size = 0x2000, scoped, tag = 'input window, operand 0, single buffered']
    #allocation4 [shape = 's32[1]{0}', space=sflag, size = 0x4, scoped, tag = 'scoped memory for tpu_custom_call.1']
    #allocation5 [shape = 's32[1]{0}', space=sflag, size = 0x4, scoped, tag = 'scoped memory for tpu_custom_call.1']
    #allocation6 [shape = 'u8[1024]{0}', space=vmem, size = 0x400, scoped, tag = 'input window, operand 1, single buffered']
    #allocation7 [shape = 's32[1]{0}', space=sflag, size = 0x4, scoped, tag = 'scoped memory for tpu_custom_call.1']
    #allocation8 [shape = 'u8[196608]{0}', space=vmem, size = 0x30000, scoped, tag = 'input window, operand 2, single buffered']
    #allocation9 [shape = 'u8[196608]{0}', space=vmem, size = 0x30000, scoped, tag = 'input window, operand 3, single buffered']
    #allocation10 [shape = 's32[1]{0}', space=sflag, size = 0x4, scoped, tag = 'scoped memory for tpu_custom_call.1']
    #allocation11 [shape = 'u8[65536]{0}', space=vmem, size = 0x10000, scoped, tag = 'input window, operand 6, single buffered']
    #allocation12 [shape = 'u8[1024]{0}', space=vmem, size = 0x400, scoped, tag = 'output window, operand 0, single buffered']
    %13 = vsyncpa [#allocation4], 0
    %14 = vsyncpa [#allocation7], 0
    %15 = vsyncpa [#allocation10], 0
    %16 = vsyncpa [#allocation5], 0
    // Predicated region
    $region2: #{tpu_custom_call.1} parent=1 // pred_check
      _
    $region3: #{tpu_custom_call.1} parent=1 // pred_check_branch
      %18 = sbr.rel (0) target = $region5
    $region4: #{tpu_custom_call.1} parent=1 // pred_region
      %s20 = ssub.s32 256, 256
      %21 = vsyncadd [#allocation4], %s20
      %s22 = sshll.u32 [#allocation3], 4
      %s23 = int_to_ptr.vmem [resolvable:$true] %s22
      %28 = dma.hbm_to_vmem [thread:$0]  %s0, 256, %s23, [#allocation4], 32, 32, 2
    $region5: #{tpu_custom_call.1} parent=1 // pred_fallthru
      _
    // Predicated region
    $region6: #{tpu_custom_call.1} parent=1 // pred_check
      _
    $region7: #{tpu_custom_call.1} parent=1 // pred_check_branch
      %30 = sbr.rel (0) target = $region9
    $region8: #{tpu_custom_call.1} parent=1 // pred_region
      %s32 = ssub.s32 32, 32
      %33 = vsyncadd [#allocation7], %s32
      %s35 = sshll.u32 [#allocation6], 4
      %s36 = int_to_ptr.vmem [resolvable:$true] %s35
      %38 = dma.hbm_to_vmem [thread:$0]  %s1, 32, %s36, [#allocation7]
    $region9: #{tpu_custom_call.1} parent=1 // pred_fallthru
      _
    // Predicated region
    $region10: #{tpu_custom_call.1} parent=1 // pred_check
      _
    $region11: #{tpu_custom_call.1} parent=1 // pred_check_branch
      %40 = sbr.rel (0) target = $region13
    $region12: #{tpu_custom_call.1} parent=1 // pred_region
      %s42 = ssub.s32 6144, 6144
      %43 = vsyncadd [#allocation7], %s42
      %s44 = sshll.u32 [#allocation8], 4
      %s45 = int_to_ptr.vmem [resolvable:$true] %s44
      %50 = dma.hbm_to_vmem [thread:$0]  %s2, 6144, %s45, [#allocation7], 384, 384, 24
    $region13: #{tpu_custom_call.1} parent=1 // pred_fallthru
      _
    // Predicated region
    $region14: #{tpu_custom_call.1} parent=1 // pred_check
      _
    $region15: #{tpu_custom_call.1} parent=1 // pred_check_branch
      %52 = sbr.rel (0) target = $region17
    $region16: #{tpu_custom_call.1} parent=1 // pred_region
      %s54 = ssub.s32 6144, 6144
      %55 = vsyncadd [#allocation10], %s54
      %s56 = sshll.u32 [#allocation9], 4
      %s57 = int_to_ptr.vmem [resolvable:$true] %s56
      %62 = dma.hbm_to_vmem [thread:$0]  %s3, 6144, %s57, [#allocation10], 384, 384, 24
    $region17: #{tpu_custom_call.1} parent=1 // pred_fallthru
      _
    // Predicated region
    $region18: #{tpu_custom_call.1} parent=1 // pred_check
      _
    $region19: #{tpu_custom_call.1} parent=1 // pred_check_branch
      %64 = sbr.rel (0) target = $region21
    $region20: #{tpu_custom_call.1} parent=1 // pred_region
      _
    $region21: #{tpu_custom_call.1} parent=1 // pred_fallthru
      _
    // Predicated region
    $region22: #{tpu_custom_call.1} parent=1 // pred_check
      _
    $region23: #{tpu_custom_call.1} parent=1 // pred_check_branch
      %66 = sbr.rel (0) target = $region25
    $region24: #{tpu_custom_call.1} parent=1 // pred_region
      _
    $region25: #{tpu_custom_call.1} parent=1 // pred_fallthru
      _
    // Predicated region
    $region26: #{tpu_custom_call.1} parent=1 // pred_check
      _
    $region27: #{tpu_custom_call.1} parent=1 // pred_check_branch
      %68 = sbr.rel (0) target = $region29
    $region28: #{tpu_custom_call.1} parent=1 // pred_region
      %s70 = ssub.s32 2048, 2048
      %71 = vsyncadd [#allocation10], %s70
      %s72 = sshll.u32 [#allocation11], 4
      %s73 = int_to_ptr.vmem [resolvable:$true] %s72
      %78 = dma.hbm_to_vmem [thread:$0]  %s6, 2048, %s73, [#allocation10], 128, 128, 8
    $region29: #{tpu_custom_call.1} parent=1 // pred_fallthru
      _
    // Predicated region
    $region30: #{tpu_custom_call.1} parent=1 // pred_check
      _
    $region31: #{tpu_custom_call.1} parent=1 // pred_check_branch
      %80 = sbr.rel (0) target = $region33
    $region32: #{tpu_custom_call.1} parent=1 // pred_region
      _
    $region33: #{tpu_custom_call.1} parent=1 // pred_fallthru
      _
    // Predicated region
    $region34: #{tpu_custom_call.1} parent=1 // pred_check
      _
    $region35: #{tpu_custom_call.1} parent=1 // pred_check_branch
      %82 = sbr.rel (0) target = $region37
    $region36: #{tpu_custom_call.1} parent=1 // pred_region
      %83 = dma.done [#allocation4], 256
    $region37: #{tpu_custom_call.1} parent=1 // pred_fallthru
      _
    // Predicated region
    $region38: #{tpu_custom_call.1} parent=1 // pred_check
      _
    $region39: #{tpu_custom_call.1} parent=1 // pred_check_branch
      %85 = sbr.rel (0) target = $region41
    $region40: #{tpu_custom_call.1} parent=1 // pred_region
      %86 = dma.done [#allocation7], 32
    $region41: #{tpu_custom_call.1} parent=1 // pred_fallthru
      _
    // Predicated region
    $region42: #{tpu_custom_call.1} parent=1 // pred_check
      _
    $region43: #{tpu_custom_call.1} parent=1 // pred_check_branch
      %88 = sbr.rel (0) target = $region45
    $region44: #{tpu_custom_call.1} parent=1 // pred_region
      %89 = dma.done [#allocation7], 6144
    $region45: #{tpu_custom_call.1} parent=1 // pred_fallthru
      _
    // Predicated region
    $region46: #{tpu_custom_call.1} parent=1 // pred_check
      _
    $region47: #{tpu_custom_call.1} parent=1 // pred_check_branch
      %91 = sbr.rel (0) target = $region49
    $region48: #{tpu_custom_call.1} parent=1 // pred_region
      %92 = dma.done [#allocation10], 6144
    $region49: #{tpu_custom_call.1} parent=1 // pred_fallthru
      _
    // Predicated region
    $region50: #{tpu_custom_call.1} parent=1 // pred_check
      _
    $region51: #{tpu_custom_call.1} parent=1 // pred_check_branch
      %94 = sbr.rel (0) target = $region53
    $region52: #{tpu_custom_call.1} parent=1 // pred_region
      %95 = dma.done [#allocation10], 2048
    $region53: #{tpu_custom_call.1} parent=1 // pred_fallthru
      _
    %v96 = vld [vmem:[#allocation3] sm:$0x3]
    %v97 = vld [vmem:[#allocation3 + $0x2] sm:$0x3]
    %v98 = vld [vmem:[#allocation3 + $0x4] sm:$0x3]
    %v99 = vld [vmem:[#allocation3 + $0x6] sm:$0x3]
    %v100 = vld [vmem:[#allocation3 + $0x8] sm:$0x3]
    %v101 = vld [vmem:[#allocation3 + $0xa] sm:$0x3]
    %v102 = vld [vmem:[#allocation3 + $0xc] sm:$0x3]
    %v103 = vld [vmem:[#allocation3 + $0xe] sm:$0x3]
    %v104 = vld [vmem:[#allocation8] sm:$0xff]
    %v105 = vld [vmem:[#allocation8 + $0x8] sm:$0xff]
    %v106 = vld [vmem:[#allocation8 + $0x10] sm:$0xff]
    %v107 = vld [vmem:[#allocation8 + $0x18] sm:$0xff]
    %v108 = vld [vmem:[#allocation8 + $0x20] sm:$0xff]
    %v109 = vld [vmem:[#allocation8 + $0x28] sm:$0xff]
    %v110 = vld [vmem:[#allocation8 + $0x30] sm:$0xff]
    %v111 = vld [vmem:[#allocation8 + $0x38] sm:$0xff]
    %v112 = vld [vmem:[#allocation8 + $0x40] sm:$0xff]
    %v113 = vld [vmem:[#allocation8 + $0x48] sm:$0xff]
    %v114 = vld [vmem:[#allocation8 + $0x50] sm:$0xff]
    %v115 = vld [vmem:[#allocation8 + $0x58] sm:$0xff]
    %v116 = vld [vmem:[#allocation8 + $0x60] sm:$0xff]
    %v117 = vld [vmem:[#allocation8 + $0x68] sm:$0xff]
    %v118 = vld [vmem:[#allocation8 + $0x70] sm:$0xff]
    %v119 = vld [vmem:[#allocation8 + $0x78] sm:$0xff]
    %v120 = vld [vmem:[#allocation8 + $0x80] sm:$0xff]
    %v121 = vld [vmem:[#allocation8 + $0x88] sm:$0xff]
    %v122 = vld [vmem:[#allocation8 + $0x90] sm:$0xff]
    %v123 = vld [vmem:[#allocation8 + $0x98] sm:$0xff]
    %v124 = vld [vmem:[#allocation8 + $0xa0] sm:$0xff]
    %v125 = vld [vmem:[#allocation8 + $0xa8] sm:$0xff]
    %v126 = vld [vmem:[#allocation8 + $0xb0] sm:$0xff]
    %v127 = vld [vmem:[#allocation8 + $0xb8] sm:$0xff]
    %v128 = vld [vmem:[#allocation8 + $0xc0] sm:$0xff]
    %v129 = vld [vmem:[#allocation8 + $0xc8] sm:$0xff]
    %v130 = vld [vmem:[#allocation8 + $0xd0] sm:$0xff]
    %v131 = vld [vmem:[#allocation8 + $0xd8] sm:$0xff]
    %v132 = vld [vmem:[#allocation8 + $0xe0] sm:$0xff]
    %v133 = vld [vmem:[#allocation8 + $0xe8] sm:$0xff]
    %v134 = vld [vmem:[#allocation8 + $0xf0] sm:$0xff]
    %v135 = vld [vmem:[#allocation8 + $0xf8] sm:$0xff]
    %v136 = vld [vmem:[#allocation8 + $0x100] sm:$0xff]
    %v137 = vld [vmem:[#allocation8 + $0x108] sm:$0xff]
    %v138 = vld [vmem:[#allocation8 + $0x110] sm:$0xff]
    %v139 = vld [vmem:[#allocation8 + $0x118] sm:$0xff]
    %v140 = vld [vmem:[#allocation8 + $0x120] sm:$0xff]
    %v141 = vld [vmem:[#allocation8 + $0x128] sm:$0xff]
    %v142 = vld [vmem:[#allocation8 + $0x130] sm:$0xff]
    %v143 = vld [vmem:[#allocation8 + $0x138] sm:$0xff]
    %v144 = vld [vmem:[#allocation8 + $0x140] sm:$0xff]
    %v145 = vld [vmem:[#allocation8 + $0x148] sm:$0xff]
    %v146 = vld [vmem:[#allocation8 + $0x150] sm:$0xff]
    %v147 = vld [vmem:[#allocation8 + $0x158] sm:$0xff]
    %v148 = vld [vmem:[#allocation8 + $0x160] sm:$0xff]
    %v149 = vld [vmem:[#allocation8 + $0x168] sm:$0xff]
    %v150 = vld [vmem:[#allocation8 + $0x170] sm:$0xff]
    %v151 = vld [vmem:[#allocation8 + $0x178] sm:$0xff]
    %v152 = vld [vmem:[%s4] sm:$0x7]
    %v154 = vlaneseq
    %v155 = vshrl.u32 %v154, 7
    %v156 = vsub.s32 0, %v155
    %v157 = vrot.slane %v152, %v156
    %v158 = vlaneseq
    %v159 = vshrl.u32 %v158, 7
    %v160 = vsub.s32 1, %v159
    %v161 = vrot.slane %v152, %v160
    %v162 = vlaneseq
    %v163 = vshrl.u32 %v162, 7
    %v164 = vsub.s32 2, %v163
    %v165 = vrot.slane %v152, %v164
    %v177 = vcombine.low %v96, %v97
    %v178 = vcombine.low %v98, %v99
    %v180 = vunpack.c.l.s4 1983009808
    %v181 = vunpack.c.0.s8 %v180
    %v182 = vlaneseq
    %v183 = vshrl.u32 %v182, 7
    %v184 = vsub.s32 %v181, %v183
    %v185 = vrot.slane %v177, %v184
    %v187 = vunpack.c.l.s4 1983009808
    %v188 = vunpack.c.0.s8 %v187
    %v189 = vlaneseq
    %v190 = vshrl.u32 %v189, 7
    %v191 = vsub.s32 %v188, %v190
    %v192 = vrot.slane %v178, %v191
    %v193 = vcombine.low %v185, %v192
    %v194 = vcombine.low %v100, %v101
    %v195 = vcombine.low %v102, %v103
    %v197 = vunpack.c.l.s4 1983009808
    %v198 = vunpack.c.0.s8 %v197
    %v199 = vlaneseq
    %v200 = vshrl.u32 %v199, 7
    %v201 = vsub.s32 %v198, %v200
    %v202 = vrot.slane %v194, %v201
    %v204 = vunpack.c.l.s4 1983009808
    %v205 = vunpack.c.0.s8 %v204
    %v206 = vlaneseq
    %v207 = vshrl.u32 %v206, 7
    %v208 = vsub.s32 %v205, %v207
    %v209 = vrot.slane %v195, %v208
    %v210 = vcombine.low %v202, %v209
    %213 = vmatprep.subr.mxu0 %v105
    %214 = vmatpush1.msra.mxu0 %v104
    %215 = vmatprep.subr.mxu0 %v108
    %216 = vmatpush1.msra.mxu0 %v107
    %217 = vmatprep.subr.mxu0 %v111
    %218 = vmatpush1.msra.mxu0 %v110
    %219 = vmatprep.subr.mxu0 %v114
    %220 = vmatpush1.msra.mxu0 %v113
    %221 = vmatprep.subr.mxu0 %v117
    %222 = vmatpush1.msra.mxu0 %v116
    %223 = vmatprep.subr.mxu0 %v120
    %224 = vmatpush1.msra.mxu0 %v119
    %225 = vmatprep.subr.mxu0 %v123
    %226 = vmatpush1.msra.mxu0 %v122
    %227 = vmatprep.subr.mxu0 %v126
    %228 = vmatpush1.msra.mxu0 %v125
    %229 = vmatprep.subr.mxu0 %v129
    %230 = vmatpush1.msra.mxu0 %v128
    %231 = vmatprep.subr.mxu0 %v132
    %232 = vmatpush1.msra.mxu0 %v131
    %233 = vmatprep.subr.mxu0 %v135
    %234 = vmatpush1.msra.mxu0 %v134
    %235 = vmatprep.subr.mxu0 %v138
    %236 = vmatpush1.msra.mxu0 %v137
    %237 = vmatprep.subr.mxu0 %v141
    %238 = vmatpush1.msra.mxu0 %v140
    %239 = vmatprep.subr.mxu0 %v144
    %240 = vmatpush1.msra.mxu0 %v143
    %241 = vmatprep.subr.mxu0 %v147
    %242 = vmatpush1.msra.mxu0 %v146
    %243 = vmatprep.subr.mxu0 %v150
    %244 = vmatpush1.msra.mxu0 %v149
    %245 = vmatprep.subr.mxu0 0.0
    %246 = vmatpush1.msra.mxu0 0.0
    %247 = vmatprep.subr.mxu0 0.0
    %248 = vmatpush1.msra.mxu0 0.0
    %249 = vmatprep.subr.mxu0 0.0
    %250 = vmatpush1.msra.mxu0 0.0
    %251 = vmatprep.subr.mxu0 0.0
    %252 = vmatpush1.msra.mxu0 0.0
    %253 = vmatprep.subr.mxu0 0.0
    %254 = vmatpush1.msra.mxu0 0.0
    %255 = vmatprep.subr.mxu0 0.0
    %256 = vmatpush1.msra.mxu0 0.0
    %257 = vmatprep.subr.mxu0 0.0
    %258 = vmatpush1.msra.mxu0 0.0
    %259 = vmatprep.subr.mxu0 0.0
    %260 = vmatpush1.msra.mxu0 0.0
    %261 = vmatprep.subr.mxu0 0.0
    %262 = vmatpush1.msra.mxu0 0.0
    %263 = vmatprep.subr.mxu0 0.0
    %264 = vmatpush1.msra.mxu0 0.0
    %265 = vmatprep.subr.mxu0 0.0
    %266 = vmatpush1.msra.mxu0 0.0
    %267 = vmatprep.subr.mxu0 0.0
    %268 = vmatpush1.msra.mxu0 0.0
    %269 = vmatprep.subr.mxu0 0.0
    %270 = vmatpush1.msra.mxu0 0.0
    %271 = vmatprep.subr.mxu0 0.0
    %272 = vmatpush1.msra.mxu0 0.0
    %273 = vmatprep.subr.mxu0 0.0
    %274 = vmatpush1.msra.mxu0 0.0
    %275 = vmatprep.subr.mxu0 0.0
    %276 = vmatpush1.msra.mxu0 0.0
    %277 = vmatprep.mubr.f32.mxu0 0.0
    %278 = vmatmul.mubr.f32.gmra.mrb[0].mxu0 %v193
    %v279 = vpop.f32.mrb[0].mxu0
    %v280 = vadd.f32 %v157, %v279
    %v281 = vpop.f32.mrb[0].mxu0
    %v282 = vadd.f32 %v161, %v281
    %283 = vmatprep.mubr.f32.mxu0 0.0
    %284 = vmatmul.mubr.f32.gmra.mrb[0].mxu0 %v210
    %v285 = vpop.f32.mrb[0].mxu0
    %v286 = vadd.f32 %v157, %v285
    %v287 = vpop.f32.mrb[0].mxu0
    %v288 = vadd.f32 %v161, %v287
    %289 = vdwg.mxu0
    %290 = vmatprep.subr.mxu0 0.0
    %291 = vmatpush1.msra.mxu0 %v106
    %292 = vmatprep.subr.mxu0 0.0
    %293 = vmatpush1.msra.mxu0 %v109
    %294 = vmatprep.subr.mxu0 0.0
    %295 = vmatpush1.msra.mxu0 %v112
    %296 = vmatprep.subr.mxu0 0.0
    %297 = vmatpush1.msra.mxu0 %v115
    %298 = vmatprep.subr.mxu0 0.0
    %299 = vmatpush1.msra.mxu0 %v118
    %300 = vmatprep.subr.mxu0 0.0
    %301 = vmatpush1.msra.mxu0 %v121
    %302 = vmatprep.subr.mxu0 0.0
    %303 = vmatpush1.msra.mxu0 %v124
    %304 = vmatprep.subr.mxu0 0.0
    %305 = vmatpush1.msra.mxu0 %v127
    %306 = vmatprep.subr.mxu0 0.0
    %307 = vmatpush1.msra.mxu0 %v130
    %308 = vmatprep.subr.mxu0 0.0
    %309 = vmatpush1.msra.mxu0 %v133
    %310 = vmatprep.subr.mxu0 0.0
    %311 = vmatpush1.msra.mxu0 %v136
    %312 = vmatprep.subr.mxu0 0.0
    %313 = vmatpush1.msra.mxu0 %v139
    %314 = vmatprep.subr.mxu0 0.0
    %315 = vmatpush1.msra.mxu0 %v142
    %316 = vmatprep.subr.mxu0 0.0
    %317 = vmatpush1.msra.mxu0 %v145
    %318 = vmatprep.subr.mxu0 0.0
    %319 = vmatpush1.msra.mxu0 %v148
    %320 = vmatprep.subr.mxu0 0.0
    %321 = vmatpush1.msra.mxu0 %v151
    %322 = vmatprep.subr.mxu0 0.0
    %323 = vmatpush1.msra.mxu0 0.0
    %324 = vmatprep.subr.mxu0 0.0
    %325 = vmatpush1.msra.mxu0 0.0
    %326 = vmatprep.subr.mxu0 0.0
    %327 = vmatpush1.msra.mxu0 0.0
    %328 = vmatprep.subr.mxu0 0.0
    %329 = vmatpush1.msra.mxu0 0.0
    %330 = vmatprep.subr.mxu0 0.0
    %331 = vmatpush1.msra.mxu0 0.0
    %332 = vmatprep.subr.mxu0 0.0
    %333 = vmatpush1.msra.mxu0 0.0
    %334 = vmatprep.subr.mxu0 0.0
    %335 = vmatpush1.msra.mxu0 0.0
    %336 = vmatprep.subr.mxu0 0.0
    %337 = vmatpush1.msra.mxu0 0.0
    %338 = vmatprep.subr.mxu0 0.0
    %339 = vmatpush1.msra.mxu0 0.0
    %340 = vmatprep.subr.mxu0 0.0
    %341 = vmatpush1.msra.mxu0 0.0
    %342 = vmatprep.subr.mxu0 0.0
    %343 = vmatpush1.msra.mxu0 0.0
    %344 = vmatprep.subr.mxu0 0.0
    %345 = vmatpush1.msra.mxu0 0.0
    %346 = vmatprep.subr.mxu0 0.0
    %347 = vmatpush1.msra.mxu0 0.0
    %348 = vmatprep.subr.mxu0 0.0
    %349 = vmatpush1.msra.mxu0 0.0
    %350 = vmatprep.subr.mxu0 0.0
    %351 = vmatpush1.msra.mxu0 0.0
    %352 = vmatprep.subr.mxu0 0.0
    %353 = vmatpush1.msra.mxu0 0.0
    %354 = vmatprep.mubr.f32.mxu0 0.0
    %355 = vmatmul.mubr.f32.gmra.mrb[0].mxu0 %v193
    %v356 = vpop.f32.mrb[0].mxu0
    %v357 = vadd.f32 %v165, %v356
    %v358 = vpop.f32.mrb[0].mxu0
    %359 = vmatprep.mubr.f32.mxu0 0.0
    %360 = vmatmul.mubr.f32.gmra.mrb[0].mxu0 %v210
    %v361 = vpop.f32.mrb[0].mxu0
    %v362 = vadd.f32 %v165, %v361
    %v363 = vpop.f32.mrb[0].mxu0
    %364 = vdwg.mxu0
    %v371 = vcombine.low %v280, %v282
    %v372 = vcombine.high %v280, %v282
    %v373 = vcombine.high %v357, %v357
    %v375 = vunpack.c.l.s4 1983009808
    %v376 = vunpack.c.0.s8 %v375
    %v377 = vlaneseq
    %v378 = vshrl.u32 %v377, 7
    %v379 = vsub.s32 %v376, %v378
    %v380 = vrot.slane %v371, %v379
    %v382 = vunpack.c.l.s4 1983009808
    %v383 = vunpack.c.0.s8 %v382
    %v384 = vlaneseq
    %v385 = vshrl.u32 %v384, 7
    %v386 = vsub.s32 %v383, %v385
    %v387 = vrot.slane %v372, %v386
    %v389 = vunpack.c.l.s4 1983009808
    %v390 = vunpack.c.0.s8 %v389
    %v391 = vlaneseq
    %v392 = vshrl.u32 %v391, 7
    %v393 = vsub.s32 %v390, %v392
    %v394 = vrot.slane %v357, %v393
    %v396 = vunpack.c.l.s4 1983009808
    %v397 = vunpack.c.0.s8 %v396
    %v398 = vlaneseq
    %v399 = vshrl.u32 %v398, 7
    %v400 = vsub.s32 %v397, %v399
    %v401 = vrot.slane %v373, %v400
    %v402 = vcombine.low %v380, %v394
    %v403 = vcombine.high %v380, %v394
    %v404 = vcombine.low %v387, %v401
    %v405 = vcombine.high %v387, %v401
    %v406 = vcombine.low %v286, %v288
    %v407 = vcombine.high %v286, %v288
    %v408 = vcombine.high %v362, %v362
    %v410 = vunpack.c.l.s4 1983009808
    %v411 = vunpack.c.0.s8 %v410
    %v412 = vlaneseq
    %v413 = vshrl.u32 %v412, 7
    %v414 = vsub.s32 %v411, %v413
    %v415 = vrot.slane %v406, %v414
    %v417 = vunpack.c.l.s4 1983009808
    %v418 = vunpack.c.0.s8 %v417
    %v419 = vlaneseq
    %v420 = vshrl.u32 %v419, 7
    %v421 = vsub.s32 %v418, %v420
    %v422 = vrot.slane %v407, %v421
    %v424 = vunpack.c.l.s4 1983009808
    %v425 = vunpack.c.0.s8 %v424
    %v426 = vlaneseq
    %v427 = vshrl.u32 %v426, 7
    %v428 = vsub.s32 %v425, %v427
    %v429 = vrot.slane %v362, %v428
    %v431 = vunpack.c.l.s4 1983009808
    %v432 = vunpack.c.0.s8 %v431
    %v433 = vlaneseq
    %v434 = vshrl.u32 %v433, 7
    %v435 = vsub.s32 %v432, %v434
    %v436 = vrot.slane %v408, %v435
    %v437 = vcombine.low %v415, %v429
    %v438 = vcombine.high %v415, %v429
    %v439 = vcombine.low %v422, %v436
    %v440 = vcombine.high %v422, %v436
    %449 = vst [vmem:[#allocation2] sm:$0x3f] %v402
    %450 = vst [vmem:[#allocation2 + $0x6] sm:$0x3f] %v403
    %451 = vst [vmem:[#allocation2 + $0xc] sm:$0x3f] %v404
    %452 = vst [vmem:[#allocation2 + $0x12] sm:$0x3f] %v405
    %453 = vst [vmem:[#allocation2 + $0x18] sm:$0x3f] %v437
    %454 = vst [vmem:[#allocation2 + $0x1e] sm:$0x3f] %v438
    %455 = vst [vmem:[#allocation2 + $0x24] sm:$0x3f] %v439
    %456 = vst [vmem:[#allocation2 + $0x2a] sm:$0x3f] %v440
    %v457 = vld [vmem:[#allocation9] sm:$0xff]
    %v458 = vld [vmem:[#allocation9 + $0x8] sm:$0xff]
    %v459 = vld [vmem:[#allocation9 + $0x10] sm:$0xff]
    %v460 = vld [vmem:[#allocation9 + $0x18] sm:$0xff]
    %v461 = vld [vmem:[#allocation9 + $0x20] sm:$0xff]
    %v462 = vld [vmem:[#allocation9 + $0x28] sm:$0xff]
    %v463 = vld [vmem:[#allocation9 + $0x30] sm:$0xff]
    %v464 = vld [vmem:[#allocation9 + $0x38] sm:$0xff]
    %v465 = vld [vmem:[#allocation9 + $0x40] sm:$0xff]
    %v466 = vld [vmem:[#allocation9 + $0x48] sm:$0xff]
    %v467 = vld [vmem:[#allocation9 + $0x50] sm:$0xff]
    %v468 = vld [vmem:[#allocation9 + $0x58] sm:$0xff]
    %v469 = vld [vmem:[#allocation9 + $0x60] sm:$0xff]
    %v470 = vld [vmem:[#allocation9 + $0x68] sm:$0xff]
    %v471 = vld [vmem:[#allocation9 + $0x70] sm:$0xff]
    %v472 = vld [vmem:[#allocation9 + $0x78] sm:$0xff]
    %v473 = vld [vmem:[#allocation9 + $0x80] sm:$0xff]
    %v474 = vld [vmem:[#allocation9 + $0x88] sm:$0xff]
    %v475 = vld [vmem:[#allocation9 + $0x90] sm:$0xff]
    %v476 = vld [vmem:[#allocation9 + $0x98] sm:$0xff]
    %v477 = vld [vmem:[#allocation9 + $0xa0] sm:$0xff]
    %v478 = vld [vmem:[#allocation9 + $0xa8] sm:$0xff]
    %v479 = vld [vmem:[#allocation9 + $0xb0] sm:$0xff]
    %v480 = vld [vmem:[#allocation9 + $0xb8] sm:$0xff]
    %v481 = vld [vmem:[#allocation9 + $0xc0] sm:$0xff]
    %v482 = vld [vmem:[#allocation9 + $0xc8] sm:$0xff]
    %v483 = vld [vmem:[#allocation9 + $0xd0] sm:$0xff]
    %v484 = vld [vmem:[#allocation9 + $0xd8] sm:$0xff]
    %v485 = vld [vmem:[#allocation9 + $0xe0] sm:$0xff]
    %v486 = vld [vmem:[#allocation9 + $0xe8] sm:$0xff]
    %v487 = vld [vmem:[#allocation9 + $0xf0] sm:$0xff]
    %v488 = vld [vmem:[#allocation9 + $0xf8] sm:$0xff]
    %v489 = vld [vmem:[#allocation9 + $0x100] sm:$0xff]
    %v490 = vld [vmem:[#allocation9 + $0x108] sm:$0xff]
    %v491 = vld [vmem:[#allocation9 + $0x110] sm:$0xff]
    %v492 = vld [vmem:[#allocation9 + $0x118] sm:$0xff]
    %v493 = vld [vmem:[#allocation9 + $0x120] sm:$0xff]
    %v494 = vld [vmem:[#allocation9 + $0x128] sm:$0xff]
    %v495 = vld [vmem:[#allocation9 + $0x130] sm:$0xff]
    %v496 = vld [vmem:[#allocation9 + $0x138] sm:$0xff]
    %v497 = vld [vmem:[#allocation9 + $0x140] sm:$0xff]
    %v498 = vld [vmem:[#allocation9 + $0x148] sm:$0xff]
    %v499 = vld [vmem:[#allocation9 + $0x150] sm:$0xff]
    %v500 = vld [vmem:[#allocation9 + $0x158] sm:$0xff]
    %v501 = vld [vmem:[#allocation9 + $0x160] sm:$0xff]
    %v502 = vld [vmem:[#allocation9 + $0x168] sm:$0xff]
    %v503 = vld [vmem:[#allocation9 + $0x170] sm:$0xff]
    %v504 = vld [vmem:[#allocation9 + $0x178] sm:$0xff]
    %v505 = vld [vmem:[%s5] sm:$0x7]
    %v506 = vld [vmem:[#allocation6] sm:$0x3]
    %v507 = vld [vmem:[#allocation2] sm:$0x3f]
    %v509 = vlaneseq
    %v510 = vshrl.u32 %v509, 7
    %v511 = vsub.s32 0, %v510
    %v512 = vrot.slane %v505, %v511
    %v513 = vlaneseq
    %v514 = vshrl.u32 %v513, 7
    %v515 = vsub.s32 1, %v514
    %v516 = vrot.slane %v505, %v515
    %v517 = vlaneseq
    %v518 = vshrl.u32 %v517, 7
    %v519 = vsub.s32 2, %v518
    %v520 = vrot.slane %v505, %v519
    %524 = vmatprep.subr.mxu0 %v458
    %525 = vmatpush1.msra.mxu0 %v457
    %526 = vmatprep.subr.mxu0 %v461
    %527 = vmatpush1.msra.mxu0 %v460
    %528 = vmatprep.subr.mxu0 %v464
    %529 = vmatpush1.msra.mxu0 %v463
    %530 = vmatprep.subr.mxu0 %v467
    %531 = vmatpush1.msra.mxu0 %v466
    %532 = vmatprep.subr.mxu0 %v470
    %533 = vmatpush1.msra.mxu0 %v469
    %534 = vmatprep.subr.mxu0 %v473
    %535 = vmatpush1.msra.mxu0 %v472
    %536 = vmatprep.subr.mxu0 %v476
    %537 = vmatpush1.msra.mxu0 %v475
    %538 = vmatprep.subr.mxu0 %v479
    %539 = vmatpush1.msra.mxu0 %v478
    %540 = vmatprep.subr.mxu0 %v482
    %541 = vmatpush1.msra.mxu0 %v481
    %542 = vmatprep.subr.mxu0 %v485
    %543 = vmatpush1.msra.mxu0 %v484
    %544 = vmatprep.subr.mxu0 %v488
    %545 = vmatpush1.msra.mxu0 %v487
    %546 = vmatprep.subr.mxu0 %v491
    %547 = vmatpush1.msra.mxu0 %v490
    %548 = vmatprep.subr.mxu0 %v494
    %549 = vmatpush1.msra.mxu0 %v493
    %550 = vmatprep.subr.mxu0 %v497
    %551 = vmatpush1.msra.mxu0 %v496
    %552 = vmatprep.subr.mxu0 %v500
    %553 = vmatpush1.msra.mxu0 %v499
    %554 = vmatprep.subr.mxu0 %v503
    %555 = vmatpush1.msra.mxu0 %v502
    %556 = vmatprep.subr.mxu0 0.0
    %557 = vmatpush1.msra.mxu0 0.0
    %558 = vmatprep.subr.mxu0 0.0
    %559 = vmatpush1.msra.mxu0 0.0
    %560 = vmatprep.subr.mxu0 0.0
    %561 = vmatpush1.msra.mxu0 0.0
    %562 = vmatprep.subr.mxu0 0.0
    %563 = vmatpush1.msra.mxu0 0.0
    %564 = vmatprep.subr.mxu0 0.0
    %565 = vmatpush1.msra.mxu0 0.0
    %566 = vmatprep.subr.mxu0 0.0
    %567 = vmatpush1.msra.mxu0 0.0
    %568 = vmatprep.subr.mxu0 0.0
    %569 = vmatpush1.msra.mxu0 0.0
    %570 = vmatprep.subr.mxu0 0.0
    %571 = vmatpush1.msra.mxu0 0.0
    %572 = vmatprep.subr.mxu0 0.0
    %573 = vmatpush1.msra.mxu0 0.0
    %574 = vmatprep.subr.mxu0 0.0
    %575 = vmatpush1.msra.mxu0 0.0
    %576 = vmatprep.subr.mxu0 0.0
    %577 = vmatpush1.msra.mxu0 0.0
    %578 = vmatprep.subr.mxu0 0.0
    %579 = vmatpush1.msra.mxu0 0.0
    %580 = vmatprep.subr.mxu0 0.0
    %581 = vmatpush1.msra.mxu0 0.0
    %582 = vmatprep.subr.mxu0 0.0
    %583 = vmatpush1.msra.mxu0 0.0
    %584 = vmatprep.subr.mxu0 0.0
    %585 = vmatpush1.msra.mxu0 0.0
    %586 = vmatprep.subr.mxu0 0.0
    %587 = vmatpush1.msra.mxu0 0.0
    %588 = vmatprep.mubr.f32.mxu0 0.0
    %589 = vmatmul.mubr.f32.gmra.mrb[0].mxu0 %v506
    %v590 = vpop.f32.mrb[0].mxu0
    %v591 = vadd.f32 %v512, %v590
    %v592 = vpop.f32.mrb[0].mxu0
    %v593 = vadd.f32 %v516, %v592
    %594 = vdwg.mxu0
    %595 = vmatprep.subr.mxu0 0.0
    %596 = vmatpush1.msra.mxu0 %v459
    %597 = vmatprep.subr.mxu0 0.0
    %598 = vmatpush1.msra.mxu0 %v462
    %599 = vmatprep.subr.mxu0 0.0
    %600 = vmatpush1.msra.mxu0 %v465
    %601 = vmatprep.subr.mxu0 0.0
    %602 = vmatpush1.msra.mxu0 %v468
    %603 = vmatprep.subr.mxu0 0.0
    %604 = vmatpush1.msra.mxu0 %v471
    %605 = vmatprep.subr.mxu0 0.0
    %606 = vmatpush1.msra.mxu0 %v474
    %607 = vmatprep.subr.mxu0 0.0
    %608 = vmatpush1.msra.mxu0 %v477
    %609 = vmatprep.subr.mxu0 0.0
    %610 = vmatpush1.msra.mxu0 %v480
    %611 = vmatprep.subr.mxu0 0.0
    %612 = vmatpush1.msra.mxu0 %v483
    %613 = vmatprep.subr.mxu0 0.0
    %614 = vmatpush1.msra.mxu0 %v486
    %615 = vmatprep.subr.mxu0 0.0
    %616 = vmatpush1.msra.mxu0 %v489
    %617 = vmatprep.subr.mxu0 0.0
    %618 = vmatpush1.msra.mxu0 %v492
    %619 = vmatprep.subr.mxu0 0.0
    %620 = vmatpush1.msra.mxu0 %v495
    %621 = vmatprep.subr.mxu0 0.0
    %622 = vmatpush1.msra.mxu0 %v498
    %623 = vmatprep.subr.mxu0 0.0
    %624 = vmatpush1.msra.mxu0 %v501
    %625 = vmatprep.subr.mxu0 0.0
    %626 = vmatpush1.msra.mxu0 %v504
    %627 = vmatprep.subr.mxu0 0.0
    %628 = vmatpush1.msra.mxu0 0.0
    %629 = vmatprep.subr.mxu0 0.0
    %630 = vmatpush1.msra.mxu0 0.0
    %631 = vmatprep.subr.mxu0 0.0
    %632 = vmatpush1.msra.mxu0 0.0
    %633 = vmatprep.subr.mxu0 0.0
    %634 = vmatpush1.msra.mxu0 0.0
    %635 = vmatprep.subr.mxu0 0.0
    %636 = vmatpush1.msra.mxu0 0.0
    %637 = vmatprep.subr.mxu0 0.0
    %638 = vmatpush1.msra.mxu0 0.0
    %639 = vmatprep.subr.mxu0 0.0
    %640 = vmatpush1.msra.mxu0 0.0
    %641 = vmatprep.subr.mxu0 0.0
    %642 = vmatpush1.msra.mxu0 0.0
    %643 = vmatprep.subr.mxu0 0.0
    %644 = vmatpush1.msra.mxu0 0.0
    %645 = vmatprep.subr.mxu0 0.0
    %646 = vmatpush1.msra.mxu0 0.0
    %647 = vmatprep.subr.mxu0 0.0
    %648 = vmatpush1.msra.mxu0 0.0
    %649 = vmatprep.subr.mxu0 0.0
    %650 = vmatpush1.msra.mxu0 0.0
    %651 = vmatprep.subr.mxu0 0.0
    %652 = vmatpush1.msra.mxu0 0.0
    %653 = vmatprep.subr.mxu0 0.0
    %654 = vmatpush1.msra.mxu0 0.0
    %655 = vmatprep.subr.mxu0 0.0
    %656 = vmatpush1.msra.mxu0 0.0
    %657 = vmatprep.subr.mxu0 0.0
    %658 = vmatpush1.msra.mxu0 0.0
    %659 = vmatprep.mubr.f32.mxu0 0.0
    %660 = vmatmul.mubr.f32.gmra.mrb[0].mxu0 %v506
    %v661 = vpop.f32.mrb[0].mxu0
    %v662 = vadd.f32 %v520, %v661
    %v663 = vpop.f32.mrb[0].mxu0
    %664 = vdwg.mxu0
    %v665 = vadd.f32 %v507, %v591
    %v666 = vxor.u32 %v665, 2147483648
    %v667 = vmul.f32 %v666, 1.442695
    %v668 = vpow.pop %v667
    %v669 = vadd.f32 %v668, 1.0
    %v670 = vrcp.pop %v669
    %v671 = vmul.f32 1.0, %v670
    %v673 = vrot.slane %v507, 2
    %v675 = vadd.f32 %v673, %v593
    %v676 = vxor.u32 %v675, 2147483648
    %v677 = vmul.f32 %v676, 1.442695
    %v678 = vpow.pop %v677
    %v679 = vadd.f32 %v678, 1.0
    %v680 = vrcp.pop %v679
    %v681 = vmul.f32 1.0, %v680
    %v682 = vmul.f32 %v671, %v662
    %v683 = vrot.slane %v507, 4
    %v685 = vadd.f32 %v683, %v682
    %v686 = vtanh.pop %v685
    %v687 = vsub.f32 1.0, %v681
    %v688 = vmul.f32 %v687, %v686
    %v689 = vmul.f32 %v681, %v506
    %v690 = vadd.f32 %v688, %v689
    %s691 = scalar_lea.vmem [#allocation2], 6
    %v692 = vld [vmem:[%s691] sm:$0x3f]
    %693 = vmatprep.subr.mxu0 %v458
    %694 = vmatpush1.msra.mxu0 %v457
    %695 = vmatprep.subr.mxu0 %v461
    %696 = vmatpush1.msra.mxu0 %v460
    %697 = vmatprep.subr.mxu0 %v464
    %698 = vmatpush1.msra.mxu0 %v463
    %699 = vmatprep.subr.mxu0 %v467
    %700 = vmatpush1.msra.mxu0 %v466
    %701 = vmatprep.subr.mxu0 %v470
    %702 = vmatpush1.msra.mxu0 %v469
    %703 = vmatprep.subr.mxu0 %v473
    %704 = vmatpush1.msra.mxu0 %v472
    %705 = vmatprep.subr.mxu0 %v476
    %706 = vmatpush1.msra.mxu0 %v475
    %707 = vmatprep.subr.mxu0 %v479
    %708 = vmatpush1.msra.mxu0 %v478
    %709 = vmatprep.subr.mxu0 %v482
    %710 = vmatpush1.msra.mxu0 %v481
    %711 = vmatprep.subr.mxu0 %v485
    %712 = vmatpush1.msra.mxu0 %v484
    %713 = vmatprep.subr.mxu0 %v488
    %714 = vmatpush1.msra.mxu0 %v487
    %715 = vmatprep.subr.mxu0 %v491
    %716 = vmatpush1.msra.mxu0 %v490
    %717 = vmatprep.subr.mxu0 %v494
    %718 = vmatpush1.msra.mxu0 %v493
    %719 = vmatprep.subr.mxu0 %v497
    %720 = vmatpush1.msra.mxu0 %v496
    %721 = vmatprep.subr.mxu0 %v500
    %722 = vmatpush1.msra.mxu0 %v499
    %723 = vmatprep.subr.mxu0 %v503
    %724 = vmatpush1.msra.mxu0 %v502
    %725 = vmatprep.subr.mxu0 0.0
    %726 = vmatpush1.msra.mxu0 0.0
    %727 = vmatprep.subr.mxu0 0.0
    %728 = vmatpush1.msra.mxu0 0.0
    %729 = vmatprep.subr.mxu0 0.0
    %730 = vmatpush1.msra.mxu0 0.0
    %731 = vmatprep.subr.mxu0 0.0
    %732 = vmatpush1.msra.mxu0 0.0
    %733 = vmatprep.subr.mxu0 0.0
    %734 = vmatpush1.msra.mxu0 0.0
    %735 = vmatprep.subr.mxu0 0.0
    %736 = vmatpush1.msra.mxu0 0.0
    %737 = vmatprep.subr.mxu0 0.0
    %738 = vmatpush1.msra.mxu0 0.0
    %739 = vmatprep.subr.mxu0 0.0
    %740 = vmatpush1.msra.mxu0 0.0
    %741 = vmatprep.subr.mxu0 0.0
    %742 = vmatpush1.msra.mxu0 0.0
    %743 = vmatprep.subr.mxu0 0.0
    %744 = vmatpush1.msra.mxu0 0.0
    %745 = vmatprep.subr.mxu0 0.0
    %746 = vmatpush1.msra.mxu0 0.0
    %747 = vmatprep.subr.mxu0 0.0
    %748 = vmatpush1.msra.mxu0 0.0
    %749 = vmatprep.subr.mxu0 0.0
    %750 = vmatpush1.msra.mxu0 0.0
    %751 = vmatprep.subr.mxu0 0.0
    %752 = vmatpush1.msra.mxu0 0.0
    %753 = vmatprep.subr.mxu0 0.0
    %754 = vmatpush1.msra.mxu0 0.0
    %755 = vmatprep.subr.mxu0 0.0
    %756 = vmatpush1.msra.mxu0 0.0
    %757 = vmatprep.mubr.f32.mxu0 0.0
    %758 = vmatmul.mubr.f32.gmra.mrb[0].mxu0 %v690
    %v759 = vpop.f32.mrb[0].mxu0
    %v760 = vadd.f32 %v512, %v759
    %v761 = vpop.f32.mrb[0].mxu0
    %v762 = vadd.f32 %v516, %v761
    %763 = vdwg.mxu0
    %764 = vmatprep.subr.mxu0 0.0
    %765 = vmatpush1.msra.mxu0 %v459
    %766 = vmatprep.subr.mxu0 0.0
    %767 = vmatpush1.msra.mxu0 %v462
    %768 = vmatprep.subr.mxu0 0.0
    %769 = vmatpush1.msra.mxu0 %v465
    %770 = vmatprep.subr.mxu0 0.0
    %771 = vmatpush1.msra.mxu0 %v468
    %772 = vmatprep.subr.mxu0 0.0
    %773 = vmatpush1.msra.mxu0 %v471
    %774 = vmatprep.subr.mxu0 0.0
    %775 = vmatpush1.msra.mxu0 %v474
    %776 = vmatprep.subr.mxu0 0.0
    %777 = vmatpush1.msra.mxu0 %v477
    %778 = vmatprep.subr.mxu0 0.0
    %779 = vmatpush1.msra.mxu0 %v480
    %780 = vmatprep.subr.mxu0 0.0
    %781 = vmatpush1.msra.mxu0 %v483
    %782 = vmatprep.subr.mxu0 0.0
    %783 = vmatpush1.msra.mxu0 %v486
    %784 = vmatprep.subr.mxu0 0.0
    %785 = vmatpush1.msra.mxu0 %v489
    %786 = vmatprep.subr.mxu0 0.0
    %787 = vmatpush1.msra.mxu0 %v492
    %788 = vmatprep.subr.mxu0 0.0
    %789 = vmatpush1.msra.mxu0 %v495
    %790 = vmatprep.subr.mxu0 0.0
    %791 = vmatpush1.msra.mxu0 %v498
    %792 = vmatprep.subr.mxu0 0.0
    %793 = vmatpush1.msra.mxu0 %v501
    %794 = vmatprep.subr.mxu0 0.0
    %795 = vmatpush1.msra.mxu0 %v504
    %796 = vmatprep.subr.mxu0 0.0
    %797 = vmatpush1.msra.mxu0 0.0
    %798 = vmatprep.subr.mxu0 0.0
    %799 = vmatpush1.msra.mxu0 0.0
    %800 = vmatprep.subr.mxu0 0.0
    %801 = vmatpush1.msra.mxu0 0.0
    %802 = vmatprep.subr.mxu0 0.0
    %803 = vmatpush1.msra.mxu0 0.0
    %804 = vmatprep.subr.mxu0 0.0
    %805 = vmatpush1.msra.mxu0 0.0
    %806 = vmatprep.subr.mxu0 0.0
    %807 = vmatpush1.msra.mxu0 0.0
    %808 = vmatprep.subr.mxu0 0.0
    %809 = vmatpush1.msra.mxu0 0.0
    %810 = vmatprep.subr.mxu0 0.0
    %811 = vmatpush1.msra.mxu0 0.0
    %812 = vmatprep.subr.mxu0 0.0
    %813 = vmatpush1.msra.mxu0 0.0
    %814 = vmatprep.subr.mxu0 0.0
    %815 = vmatpush1.msra.mxu0 0.0
    %816 = vmatprep.subr.mxu0 0.0
    %817 = vmatpush1.msra.mxu0 0.0
    %818 = vmatprep.subr.mxu0 0.0
    %819 = vmatpush1.msra.mxu0 0.0
    %820 = vmatprep.subr.mxu0 0.0
    %821 = vmatpush1.msra.mxu0 0.0
    %822 = vmatprep.subr.mxu0 0.0
    %823 = vmatpush1.msra.mxu0 0.0
    %824 = vmatprep.subr.mxu0 0.0
    %825 = vmatpush1.msra.mxu0 0.0
    %826 = vmatprep.subr.mxu0 0.0
    %827 = vmatpush1.msra.mxu0 0.0
    %828 = vmatprep.mubr.f32.mxu0 0.0
    %829 = vmatmul.mubr.f32.gmra.mrb[0].mxu0 %v690
    %v830 = vpop.f32.mrb[0].mxu0
    %v831 = vadd.f32 %v520, %v830
    %v832 = vpop.f32.mrb[0].mxu0
    %833 = vdwg.mxu0
    %v834 = vadd.f32 %v692, %v760
    %v835 = vxor.u32 %v834, 2147483648
    %v836 = vmul.f32 %v835, 1.442695
    %v837 = vpow.pop %v836
    %v838 = vadd.f32 %v837, 1.0
    %v839 = vrcp.pop %v838
    %v840 = vmul.f32 1.0, %v839
    %v842 = vrot.slane %v692, 2
    %v844 = vadd.f32 %v842, %v762
    %v845 = vxor.u32 %v844, 2147483648
    %v846 = vmul.f32 %v845, 1.442695
    %v847 = vpow.pop %v846
    %v848 = vadd.f32 %v847, 1.0
    %v849 = vrcp.pop %v848
    %v850 = vmul.f32 1.0, %v849
    %v851 = vmul.f32 %v840, %v831
    %v852 = vrot.slane %v692, 4
    %v854 = vadd.f32 %v852, %v851
    %v855 = vtanh.pop %v854
    %v856 = vsub.f32 1.0, %v850
    %v857 = vmul.f32 %v856, %v855
    %v858 = vmul.f32 %v850, %v690
    %v859 = vadd.f32 %v857, %v858
    %s860 = scalar_lea.vmem [#allocation2], 12
    %v861 = vld [vmem:[%s860] sm:$0x3f]
    %862 = vmatprep.subr.mxu0 %v458
    %863 = vmatpush1.msra.mxu0 %v457
    %864 = vmatprep.subr.mxu0 %v461
    %865 = vmatpush1.msra.mxu0 %v460
    %866 = vmatprep.subr.mxu0 %v464
    %867 = vmatpush1.msra.mxu0 %v463
    %868 = vmatprep.subr.mxu0 %v467
    %869 = vmatpush1.msra.mxu0 %v466
    %870 = vmatprep.subr.mxu0 %v470
    %871 = vmatpush1.msra.mxu0 %v469
    %872 = vmatprep.subr.mxu0 %v473
    %873 = vmatpush1.msra.mxu0 %v472
    %874 = vmatprep.subr.mxu0 %v476
    %875 = vmatpush1.msra.mxu0 %v475
    %876 = vmatprep.subr.mxu0 %v479
    %877 = vmatpush1.msra.mxu0 %v478
    %878 = vmatprep.subr.mxu0 %v482
    %879 = vmatpush1.msra.mxu0 %v481
    %880 = vmatprep.subr.mxu0 %v485
    %881 = vmatpush1.msra.mxu0 %v484
    %882 = vmatprep.subr.mxu0 %v488
    %883 = vmatpush1.msra.mxu0 %v487
    %884 = vmatprep.subr.mxu0 %v491
    %885 = vmatpush1.msra.mxu0 %v490
    %886 = vmatprep.subr.mxu0 %v494
    %887 = vmatpush1.msra.mxu0 %v493
    %888 = vmatprep.subr.mxu0 %v497
    %889 = vmatpush1.msra.mxu0 %v496
    %890 = vmatprep.subr.mxu0 %v500
    %891 = vmatpush1.msra.mxu0 %v499
    %892 = vmatprep.subr.mxu0 %v503
    %893 = vmatpush1.msra.mxu0 %v502
    %894 = vmatprep.subr.mxu0 0.0
    %895 = vmatpush1.msra.mxu0 0.0
    %896 = vmatprep.subr.mxu0 0.0
    %897 = vmatpush1.msra.mxu0 0.0
    %898 = vmatprep.subr.mxu0 0.0
    %899 = vmatpush1.msra.mxu0 0.0
    %900 = vmatprep.subr.mxu0 0.0
    %901 = vmatpush1.msra.mxu0 0.0
    %902 = vmatprep.subr.mxu0 0.0
    %903 = vmatpush1.msra.mxu0 0.0
    %904 = vmatprep.subr.mxu0 0.0
    %905 = vmatpush1.msra.mxu0 0.0
    %906 = vmatprep.subr.mxu0 0.0
    %907 = vmatpush1.msra.mxu0 0.0
    %908 = vmatprep.subr.mxu0 0.0
    %909 = vmatpush1.msra.mxu0 0.0
    %910 = vmatprep.subr.mxu0 0.0
    %911 = vmatpush1.msra.mxu0 0.0
    %912 = vmatprep.subr.mxu0 0.0
    %913 = vmatpush1.msra.mxu0 0.0
    %914 = vmatprep.subr.mxu0 0.0
    %915 = vmatpush1.msra.mxu0 0.0
    %916 = vmatprep.subr.mxu0 0.0
    %917 = vmatpush1.msra.mxu0 0.0
    %918 = vmatprep.subr.mxu0 0.0
    %919 = vmatpush1.msra.mxu0 0.0
    %920 = vmatprep.subr.mxu0 0.0
    %921 = vmatpush1.msra.mxu0 0.0
    %922 = vmatprep.subr.mxu0 0.0
    %923 = vmatpush1.msra.mxu0 0.0
    %924 = vmatprep.subr.mxu0 0.0
    %925 = vmatpush1.msra.mxu0 0.0
    %926 = vmatprep.mubr.f32.mxu0 0.0
    %927 = vmatmul.mubr.f32.gmra.mrb[0].mxu0 %v859
    %v928 = vpop.f32.mrb[0].mxu0
    %v929 = vadd.f32 %v512, %v928
    %v930 = vpop.f32.mrb[0].mxu0
    %v931 = vadd.f32 %v516, %v930
    %932 = vdwg.mxu0
    %933 = vmatprep.subr.mxu0 0.0
    %934 = vmatpush1.msra.mxu0 %v459
    %935 = vmatprep.subr.mxu0 0.0
    %936 = vmatpush1.msra.mxu0 %v462
    %937 = vmatprep.subr.mxu0 0.0
    %938 = vmatpush1.msra.mxu0 %v465
    %939 = vmatprep.subr.mxu0 0.0
    %940 = vmatpush1.msra.mxu0 %v468
    %941 = vmatprep.subr.mxu0 0.0
    %942 = vmatpush1.msra.mxu0 %v471
    %943 = vmatprep.subr.mxu0 0.0
    %944 = vmatpush1.msra.mxu0 %v474
    %945 = vmatprep.subr.mxu0 0.0
    %946 = vmatpush1.msra.mxu0 %v477
    %947 = vmatprep.subr.mxu0 0.0
    %948 = vmatpush1.msra.mxu0 %v480
    %949 = vmatprep.subr.mxu0 0.0
    %950 = vmatpush1.msra.mxu0 %v483
    %951 = vmatprep.subr.mxu0 0.0
    %952 = vmatpush1.msra.mxu0 %v486
    %953 = vmatprep.subr.mxu0 0.0
    %954 = vmatpush1.msra.mxu0 %v489
    %955 = vmatprep.subr.mxu0 0.0
    %956 = vmatpush1.msra.mxu0 %v492
    %957 = vmatprep.subr.mxu0 0.0
    %958 = vmatpush1.msra.mxu0 %v495
    %959 = vmatprep.subr.mxu0 0.0
    %960 = vmatpush1.msra.mxu0 %v498
    %961 = vmatprep.subr.mxu0 0.0
    %962 = vmatpush1.msra.mxu0 %v501
    %963 = vmatprep.subr.mxu0 0.0
    %964 = vmatpush1.msra.mxu0 %v504
    %965 = vmatprep.subr.mxu0 0.0
    %966 = vmatpush1.msra.mxu0 0.0
    %967 = vmatprep.subr.mxu0 0.0
    %968 = vmatpush1.msra.mxu0 0.0
    %969 = vmatprep.subr.mxu0 0.0
    %970 = vmatpush1.msra.mxu0 0.0
    %971 = vmatprep.subr.mxu0 0.0
    %972 = vmatpush1.msra.mxu0 0.0
    %973 = vmatprep.subr.mxu0 0.0
    %974 = vmatpush1.msra.mxu0 0.0
    %975 = vmatprep.subr.mxu0 0.0
    %976 = vmatpush1.msra.mxu0 0.0
    %977 = vmatprep.subr.mxu0 0.0
    %978 = vmatpush1.msra.mxu0 0.0
    %979 = vmatprep.subr.mxu0 0.0
    %980 = vmatpush1.msra.mxu0 0.0
    %981 = vmatprep.subr.mxu0 0.0
    %982 = vmatpush1.msra.mxu0 0.0
    %983 = vmatprep.subr.mxu0 0.0
    %984 = vmatpush1.msra.mxu0 0.0
    %985 = vmatprep.subr.mxu0 0.0
    %986 = vmatpush1.msra.mxu0 0.0
    %987 = vmatprep.subr.mxu0 0.0
    %988 = vmatpush1.msra.mxu0 0.0
    %989 = vmatprep.subr.mxu0 0.0
    %990 = vmatpush1.msra.mxu0 0.0
    %991 = vmatprep.subr.mxu0 0.0
    %992 = vmatpush1.msra.mxu0 0.0
    %993 = vmatprep.subr.mxu0 0.0
    %994 = vmatpush1.msra.mxu0 0.0
    %995 = vmatprep.subr.mxu0 0.0
    %996 = vmatpush1.msra.mxu0 0.0
    %997 = vmatprep.mubr.f32.mxu0 0.0
    %998 = vmatmul.mubr.f32.gmra.mrb[0].mxu0 %v859
    %v999 = vpop.f32.mrb[0].mxu0
    %v1000 = vadd.f32 %v520, %v999
    %v1001 = vpop.f32.mrb[0].mxu0
    %1002 = vdwg.mxu0
    %v1003 = vadd.f32 %v861, %v929
    %v1004 = vxor.u32 %v1003, 2147483648
    %v1005 = vmul.f32 %v1004, 1.442695
    %v1006 = vpow.pop %v1005
    %v1007 = vadd.f32 %v1006, 1.0
    %v1008 = vrcp.pop %v1007
    %v1009 = vmul.f32 1.0, %v1008
    %v1011 = vrot.slane %v861, 2
    %v1013 = vadd.f32 %v1011, %v931
    %v1014 = vxor.u32 %v1013, 2147483648
    %v1015 = vmul.f32 %v1014, 1.442695
    %v1016 = vpow.pop %v1015
    %v1017 = vadd.f32 %v1016, 1.0
    %v1018 = vrcp.pop %v1017
    %v1019 = vmul.f32 1.0, %v1018
    %v1020 = vmul.f32 %v1009, %v1000
    %v1021 = vrot.slane %v861, 4
    %v1023 = vadd.f32 %v1021, %v1020
    %v1024 = vtanh.pop %v1023
    %v1025 = vsub.f32 1.0, %v1019
    %v1026 = vmul.f32 %v1025, %v1024
    %v1027 = vmul.f32 %v1019, %v859
    %v1028 = vadd.f32 %v1026, %v1027
    %s1029 = scalar_lea.vmem [#allocation2], 18
    %v1030 = vld [vmem:[%s1029] sm:$0x3f]
    %1031 = vmatprep.subr.mxu0 %v458
    %1032 = vmatpush1.msra.mxu0 %v457
    %1033 = vmatprep.subr.mxu0 %v461
    %1034 = vmatpush1.msra.mxu0 %v460
    %1035 = vmatprep.subr.mxu0 %v464
    %1036 = vmatpush1.msra.mxu0 %v463
    %1037 = vmatprep.subr.mxu0 %v467
    %1038 = vmatpush1.msra.mxu0 %v466
    %1039 = vmatprep.subr.mxu0 %v470
    %1040 = vmatpush1.msra.mxu0 %v469
    %1041 = vmatprep.subr.mxu0 %v473
    %1042 = vmatpush1.msra.mxu0 %v472
    %1043 = vmatprep.subr.mxu0 %v476
    %1044 = vmatpush1.msra.mxu0 %v475
    %1045 = vmatprep.subr.mxu0 %v479
    %1046 = vmatpush1.msra.mxu0 %v478
    %1047 = vmatprep.subr.mxu0 %v482
    %1048 = vmatpush1.msra.mxu0 %v481
    %1049 = vmatprep.subr.mxu0 %v485
    %1050 = vmatpush1.msra.mxu0 %v484
    %1051 = vmatprep.subr.mxu0 %v488
    %1052 = vmatpush1.msra.mxu0 %v487
    %1053 = vmatprep.subr.mxu0 %v491
    %1054 = vmatpush1.msra.mxu0 %v490
    %1055 = vmatprep.subr.mxu0 %v494
    %1056 = vmatpush1.msra.mxu0 %v493
    %1057 = vmatprep.subr.mxu0 %v497
    %1058 = vmatpush1.msra.mxu0 %v496
    %1059 = vmatprep.subr.mxu0 %v500
    %1060 = vmatpush1.msra.mxu0 %v499
    %1061 = vmatprep.subr.mxu0 %v503
    %1062 = vmatpush1.msra.mxu0 %v502
    %1063 = vmatprep.subr.mxu0 0.0
    %1064 = vmatpush1.msra.mxu0 0.0
    %1065 = vmatprep.subr.mxu0 0.0
    %1066 = vmatpush1.msra.mxu0 0.0
    %1067 = vmatprep.subr.mxu0 0.0
    %1068 = vmatpush1.msra.mxu0 0.0
    %1069 = vmatprep.subr.mxu0 0.0
    %1070 = vmatpush1.msra.mxu0 0.0
    %1071 = vmatprep.subr.mxu0 0.0
    %1072 = vmatpush1.msra.mxu0 0.0
    %1073 = vmatprep.subr.mxu0 0.0
    %1074 = vmatpush1.msra.mxu0 0.0
    %1075 = vmatprep.subr.mxu0 0.0
    %1076 = vmatpush1.msra.mxu0 0.0
    %1077 = vmatprep.subr.mxu0 0.0
    %1078 = vmatpush1.msra.mxu0 0.0
    %1079 = vmatprep.subr.mxu0 0.0
    %1080 = vmatpush1.msra.mxu0 0.0
    %1081 = vmatprep.subr.mxu0 0.0
    %1082 = vmatpush1.msra.mxu0 0.0
    %1083 = vmatprep.subr.mxu0 0.0
    %1084 = vmatpush1.msra.mxu0 0.0
    %1085 = vmatprep.subr.mxu0 0.0
    %1086 = vmatpush1.msra.mxu0 0.0
    %1087 = vmatprep.subr.mxu0 0.0
    %1088 = vmatpush1.msra.mxu0 0.0
    %1089 = vmatprep.subr.mxu0 0.0
    %1090 = vmatpush1.msra.mxu0 0.0
    %1091 = vmatprep.subr.mxu0 0.0
    %1092 = vmatpush1.msra.mxu0 0.0
    %1093 = vmatprep.subr.mxu0 0.0
    %1094 = vmatpush1.msra.mxu0 0.0
    %1095 = vmatprep.mubr.f32.mxu0 0.0
    %1096 = vmatmul.mubr.f32.gmra.mrb[0].mxu0 %v1028
    %v1097 = vpop.f32.mrb[0].mxu0
    %v1098 = vadd.f32 %v512, %v1097
    %v1099 = vpop.f32.mrb[0].mxu0
    %v1100 = vadd.f32 %v516, %v1099
    %1101 = vdwg.mxu0
    %1102 = vmatprep.subr.mxu0 0.0
    %1103 = vmatpush1.msra.mxu0 %v459
    %1104 = vmatprep.subr.mxu0 0.0
    %1105 = vmatpush1.msra.mxu0 %v462
    %1106 = vmatprep.subr.mxu0 0.0
    %1107 = vmatpush1.msra.mxu0 %v465
    %1108 = vmatprep.subr.mxu0 0.0
    %1109 = vmatpush1.msra.mxu0 %v468
    %1110 = vmatprep.subr.mxu0 0.0
    %1111 = vmatpush1.msra.mxu0 %v471
    %1112 = vmatprep.subr.mxu0 0.0
    %1113 = vmatpush1.msra.mxu0 %v474
    %1114 = vmatprep.subr.mxu0 0.0
    %1115 = vmatpush1.msra.mxu0 %v477
    %1116 = vmatprep.subr.mxu0 0.0
    %1117 = vmatpush1.msra.mxu0 %v480
    %1118 = vmatprep.subr.mxu0 0.0
    %1119 = vmatpush1.msra.mxu0 %v483
    %1120 = vmatprep.subr.mxu0 0.0
    %1121 = vmatpush1.msra.mxu0 %v486
    %1122 = vmatprep.subr.mxu0 0.0
    %1123 = vmatpush1.msra.mxu0 %v489
    %1124 = vmatprep.subr.mxu0 0.0
    %1125 = vmatpush1.msra.mxu0 %v492
    %1126 = vmatprep.subr.mxu0 0.0
    %1127 = vmatpush1.msra.mxu0 %v495
    %1128 = vmatprep.subr.mxu0 0.0
    %1129 = vmatpush1.msra.mxu0 %v498
    %1130 = vmatprep.subr.mxu0 0.0
    %1131 = vmatpush1.msra.mxu0 %v501
    %1132 = vmatprep.subr.mxu0 0.0
    %1133 = vmatpush1.msra.mxu0 %v504
    %1134 = vmatprep.subr.mxu0 0.0
    %1135 = vmatpush1.msra.mxu0 0.0
    %1136 = vmatprep.subr.mxu0 0.0
    %1137 = vmatpush1.msra.mxu0 0.0
    %1138 = vmatprep.subr.mxu0 0.0
    %1139 = vmatpush1.msra.mxu0 0.0
    %1140 = vmatprep.subr.mxu0 0.0
    %1141 = vmatpush1.msra.mxu0 0.0
    %1142 = vmatprep.subr.mxu0 0.0
    %1143 = vmatpush1.msra.mxu0 0.0
    %1144 = vmatprep.subr.mxu0 0.0
    %1145 = vmatpush1.msra.mxu0 0.0
    %1146 = vmatprep.subr.mxu0 0.0
    %1147 = vmatpush1.msra.mxu0 0.0
    %1148 = vmatprep.subr.mxu0 0.0
    %1149 = vmatpush1.msra.mxu0 0.0
    %1150 = vmatprep.subr.mxu0 0.0
    %1151 = vmatpush1.msra.mxu0 0.0
    %1152 = vmatprep.subr.mxu0 0.0
    %1153 = vmatpush1.msra.mxu0 0.0
    %1154 = vmatprep.subr.mxu0 0.0
    %1155 = vmatpush1.msra.mxu0 0.0
    %1156 = vmatprep.subr.mxu0 0.0
    %1157 = vmatpush1.msra.mxu0 0.0
    %1158 = vmatprep.subr.mxu0 0.0
    %1159 = vmatpush1.msra.mxu0 0.0
    %1160 = vmatprep.subr.mxu0 0.0
    %1161 = vmatpush1.msra.mxu0 0.0
    %1162 = vmatprep.subr.mxu0 0.0
    %1163 = vmatpush1.msra.mxu0 0.0
    %1164 = vmatprep.subr.mxu0 0.0
    %1165 = vmatpush1.msra.mxu0 0.0
    %1166 = vmatprep.mubr.f32.mxu0 0.0
    %1167 = vmatmul.mubr.f32.gmra.mrb[0].mxu0 %v1028
    %v1168 = vpop.f32.mrb[0].mxu0
    %v1169 = vadd.f32 %v520, %v1168
    %v1170 = vpop.f32.mrb[0].mxu0
    %1171 = vdwg.mxu0
    %v1172 = vadd.f32 %v1030, %v1098
    %v1173 = vxor.u32 %v1172, 2147483648
    %v1174 = vmul.f32 %v1173, 1.442695
    %v1175 = vpow.pop %v1174
    %v1176 = vadd.f32 %v1175, 1.0
    %v1177 = vrcp.pop %v1176
    %v1178 = vmul.f32 1.0, %v1177
    %v1180 = vrot.slane %v1030, 2
    %v1182 = vadd.f32 %v1180, %v1100
    %v1183 = vxor.u32 %v1182, 2147483648
    %v1184 = vmul.f32 %v1183, 1.442695
    %v1185 = vpow.pop %v1184
    %v1186 = vadd.f32 %v1185, 1.0
    %v1187 = vrcp.pop %v1186
    %v1188 = vmul.f32 1.0, %v1187
    %v1189 = vmul.f32 %v1178, %v1169
    %v1190 = vrot.slane %v1030, 4
    %v1192 = vadd.f32 %v1190, %v1189
    %v1193 = vtanh.pop %v1192
    %v1194 = vsub.f32 1.0, %v1188
    %v1195 = vmul.f32 %v1194, %v1193
    %v1196 = vmul.f32 %v1188, %v1028
    %v1197 = vadd.f32 %v1195, %v1196
    %s1198 = scalar_lea.vmem [#allocation2], 24
    %v1199 = vld [vmem:[%s1198] sm:$0x3f]
    %1200 = vmatprep.subr.mxu0 %v458
    %1201 = vmatpush1.msra.mxu0 %v457
    %1202 = vmatprep.subr.mxu0 %v461
    %1203 = vmatpush1.msra.mxu0 %v460
    %1204 = vmatprep.subr.mxu0 %v464
    %1205 = vmatpush1.msra.mxu0 %v463
    %1206 = vmatprep.subr.mxu0 %v467
    %1207 = vmatpush1.msra.mxu0 %v466
    %1208 = vmatprep.subr.mxu0 %v470
    %1209 = vmatpush1.msra.mxu0 %v469
    %1210 = vmatprep.subr.mxu0 %v473
    %1211 = vmatpush1.msra.mxu0 %v472
    %1212 = vmatprep.subr.mxu0 %v476
    %1213 = vmatpush1.msra.mxu0 %v475
    %1214 = vmatprep.subr.mxu0 %v479
    %1215 = vmatpush1.msra.mxu0 %v478
    %1216 = vmatprep.subr.mxu0 %v482
    %1217 = vmatpush1.msra.mxu0 %v481
    %1218 = vmatprep.subr.mxu0 %v485
    %1219 = vmatpush1.msra.mxu0 %v484
    %1220 = vmatprep.subr.mxu0 %v488
    %1221 = vmatpush1.msra.mxu0 %v487
    %1222 = vmatprep.subr.mxu0 %v491
    %1223 = vmatpush1.msra.mxu0 %v490
    %1224 = vmatprep.subr.mxu0 %v494
    %1225 = vmatpush1.msra.mxu0 %v493
    %1226 = vmatprep.subr.mxu0 %v497
    %1227 = vmatpush1.msra.mxu0 %v496
    %1228 = vmatprep.subr.mxu0 %v500
    %1229 = vmatpush1.msra.mxu0 %v499
    %1230 = vmatprep.subr.mxu0 %v503
    %1231 = vmatpush1.msra.mxu0 %v502
    %1232 = vmatprep.subr.mxu0 0.0
    %1233 = vmatpush1.msra.mxu0 0.0
    %1234 = vmatprep.subr.mxu0 0.0
    %1235 = vmatpush1.msra.mxu0 0.0
    %1236 = vmatprep.subr.mxu0 0.0
    %1237 = vmatpush1.msra.mxu0 0.0
    %1238 = vmatprep.subr.mxu0 0.0
    %1239 = vmatpush1.msra.mxu0 0.0
    %1240 = vmatprep.subr.mxu0 0.0
    %1241 = vmatpush1.msra.mxu0 0.0
    %1242 = vmatprep.subr.mxu0 0.0
    %1243 = vmatpush1.msra.mxu0 0.0
    %1244 = vmatprep.subr.mxu0 0.0
    %1245 = vmatpush1.msra.mxu0 0.0
    %1246 = vmatprep.subr.mxu0 0.0
    %1247 = vmatpush1.msra.mxu0 0.0
    %1248 = vmatprep.subr.mxu0 0.0
    %1249 = vmatpush1.msra.mxu0 0.0
    %1250 = vmatprep.subr.mxu0 0.0
    %1251 = vmatpush1.msra.mxu0 0.0
    %1252 = vmatprep.subr.mxu0 0.0
    %1253 = vmatpush1.msra.mxu0 0.0
    %1254 = vmatprep.subr.mxu0 0.0
    %1255 = vmatpush1.msra.mxu0 0.0
    %1256 = vmatprep.subr.mxu0 0.0
    %1257 = vmatpush1.msra.mxu0 0.0
    %1258 = vmatprep.subr.mxu0 0.0
    %1259 = vmatpush1.msra.mxu0 0.0
    %1260 = vmatprep.subr.mxu0 0.0
    %1261 = vmatpush1.msra.mxu0 0.0
    %1262 = vmatprep.subr.mxu0 0.0
    %1263 = vmatpush1.msra.mxu0 0.0
    %1264 = vmatprep.mubr.f32.mxu0 0.0
    %1265 = vmatmul.mubr.f32.gmra.mrb[0].mxu0 %v1197
    %v1266 = vpop.f32.mrb[0].mxu0
    %v1267 = vadd.f32 %v512, %v1266
    %v1268 = vpop.f32.mrb[0].mxu0
    %v1269 = vadd.f32 %v516, %v1268
    %1270 = vdwg.mxu0
    %1271 = vmatprep.subr.mxu0 0.0
    %1272 = vmatpush1.msra.mxu0 %v459
    %1273 = vmatprep.subr.mxu0 0.0
    %1274 = vmatpush1.msra.mxu0 %v462
    %1275 = vmatprep.subr.mxu0 0.0
    %1276 = vmatpush1.msra.mxu0 %v465
    %1277 = vmatprep.subr.mxu0 0.0
    %1278 = vmatpush1.msra.mxu0 %v468
    %1279 = vmatprep.subr.mxu0 0.0
    %1280 = vmatpush1.msra.mxu0 %v471
    %1281 = vmatprep.subr.mxu0 0.0
    %1282 = vmatpush1.msra.mxu0 %v474
    %1283 = vmatprep.subr.mxu0 0.0
    %1284 = vmatpush1.msra.mxu0 %v477
    %1285 = vmatprep.subr.mxu0 0.0
    %1286 = vmatpush1.msra.mxu0 %v480
    %1287 = vmatprep.subr.mxu0 0.0
    %1288 = vmatpush1.msra.mxu0 %v483
    %1289 = vmatprep.subr.mxu0 0.0
    %1290 = vmatpush1.msra.mxu0 %v486
    %1291 = vmatprep.subr.mxu0 0.0
    %1292 = vmatpush1.msra.mxu0 %v489
    %1293 = vmatprep.subr.mxu0 0.0
    %1294 = vmatpush1.msra.mxu0 %v492
    %1295 = vmatprep.subr.mxu0 0.0
    %1296 = vmatpush1.msra.mxu0 %v495
    %1297 = vmatprep.subr.mxu0 0.0
    %1298 = vmatpush1.msra.mxu0 %v498
    %1299 = vmatprep.subr.mxu0 0.0
    %1300 = vmatpush1.msra.mxu0 %v501
    %1301 = vmatprep.subr.mxu0 0.0
    %1302 = vmatpush1.msra.mxu0 %v504
    %1303 = vmatprep.subr.mxu0 0.0
    %1304 = vmatpush1.msra.mxu0 0.0
    %1305 = vmatprep.subr.mxu0 0.0
    %1306 = vmatpush1.msra.mxu0 0.0
    %1307 = vmatprep.subr.mxu0 0.0
    %1308 = vmatpush1.msra.mxu0 0.0
    %1309 = vmatprep.subr.mxu0 0.0
    %1310 = vmatpush1.msra.mxu0 0.0
    %1311 = vmatprep.subr.mxu0 0.0
    %1312 = vmatpush1.msra.mxu0 0.0
    %1313 = vmatprep.subr.mxu0 0.0
    %1314 = vmatpush1.msra.mxu0 0.0
    %1315 = vmatprep.subr.mxu0 0.0
    %1316 = vmatpush1.msra.mxu0 0.0
    %1317 = vmatprep.subr.mxu0 0.0
    %1318 = vmatpush1.msra.mxu0 0.0
    %1319 = vmatprep.subr.mxu0 0.0
    %1320 = vmatpush1.msra.mxu0 0.0
    %1321 = vmatprep.subr.mxu0 0.0
    %1322 = vmatpush1.msra.mxu0 0.0
    %1323 = vmatprep.subr.mxu0 0.0
    %1324 = vmatpush1.msra.mxu0 0.0
    %1325 = vmatprep.subr.mxu0 0.0
    %1326 = vmatpush1.msra.mxu0 0.0
    %1327 = vmatprep.subr.mxu0 0.0
    %1328 = vmatpush1.msra.mxu0 0.0
    %1329 = vmatprep.subr.mxu0 0.0
    %1330 = vmatpush1.msra.mxu0 0.0
    %1331 = vmatprep.subr.mxu0 0.0
    %1332 = vmatpush1.msra.mxu0 0.0
    %1333 = vmatprep.subr.mxu0 0.0
    %1334 = vmatpush1.msra.mxu0 0.0
    %1335 = vmatprep.mubr.f32.mxu0 0.0
    %1336 = vmatmul.mubr.f32.gmra.mrb[0].mxu0 %v1197
    %v1337 = vpop.f32.mrb[0].mxu0
    %v1338 = vadd.f32 %v520, %v1337
    %v1339 = vpop.f32.mrb[0].mxu0
    %1340 = vdwg.mxu0
    %v1341 = vadd.f32 %v1199, %v1267
    %v1342 = vxor.u32 %v1341, 2147483648
    %v1343 = vmul.f32 %v1342, 1.442695
    %v1344 = vpow.pop %v1343
    %v1345 = vadd.f32 %v1344, 1.0
    %v1346 = vrcp.pop %v1345
    %v1347 = vmul.f32 1.0, %v1346
    %v1349 = vrot.slane %v1199, 2
    %v1351 = vadd.f32 %v1349, %v1269
    %v1352 = vxor.u32 %v1351, 2147483648
    %v1353 = vmul.f32 %v1352, 1.442695
    %v1354 = vpow.pop %v1353
    %v1355 = vadd.f32 %v1354, 1.0
    %v1356 = vrcp.pop %v1355
    %v1357 = vmul.f32 1.0, %v1356
    %v1358 = vmul.f32 %v1347, %v1338
    %v1359 = vrot.slane %v1199, 4
    %v1361 = vadd.f32 %v1359, %v1358
    %v1362 = vtanh.pop %v1361
    %v1363 = vsub.f32 1.0, %v1357
    %v1364 = vmul.f32 %v1363, %v1362
    %v1365 = vmul.f32 %v1357, %v1197
    %v1366 = vadd.f32 %v1364, %v1365
    %s1367 = scalar_lea.vmem [#allocation2], 30
    %v1368 = vld [vmem:[%s1367] sm:$0x3f]
    %1369 = vmatprep.subr.mxu0 %v458
    %1370 = vmatpush1.msra.mxu0 %v457
    %1371 = vmatprep.subr.mxu0 %v461
    %1372 = vmatpush1.msra.mxu0 %v460
    %1373 = vmatprep.subr.mxu0 %v464
    %1374 = vmatpush1.msra.mxu0 %v463
    %1375 = vmatprep.subr.mxu0 %v467
    %1376 = vmatpush1.msra.mxu0 %v466
    %1377 = vmatprep.subr.mxu0 %v470
    %1378 = vmatpush1.msra.mxu0 %v469
    %1379 = vmatprep.subr.mxu0 %v473
    %1380 = vmatpush1.msra.mxu0 %v472
    %1381 = vmatprep.subr.mxu0 %v476
    %1382 = vmatpush1.msra.mxu0 %v475
    %1383 = vmatprep.subr.mxu0 %v479
    %1384 = vmatpush1.msra.mxu0 %v478
    %1385 = vmatprep.subr.mxu0 %v482
    %1386 = vmatpush1.msra.mxu0 %v481
    %1387 = vmatprep.subr.mxu0 %v485
    %1388 = vmatpush1.msra.mxu0 %v484
    %1389 = vmatprep.subr.mxu0 %v488
    %1390 = vmatpush1.msra.mxu0 %v487
    %1391 = vmatprep.subr.mxu0 %v491
    %1392 = vmatpush1.msra.mxu0 %v490
    %1393 = vmatprep.subr.mxu0 %v494
    %1394 = vmatpush1.msra.mxu0 %v493
    %1395 = vmatprep.subr.mxu0 %v497
    %1396 = vmatpush1.msra.mxu0 %v496
    %1397 = vmatprep.subr.mxu0 %v500
    %1398 = vmatpush1.msra.mxu0 %v499
    %1399 = vmatprep.subr.mxu0 %v503
    %1400 = vmatpush1.msra.mxu0 %v502
    %1401 = vmatprep.subr.mxu0 0.0
    %1402 = vmatpush1.msra.mxu0 0.0
    %1403 = vmatprep.subr.mxu0 0.0
    %1404 = vmatpush1.msra.mxu0 0.0
    %1405 = vmatprep.subr.mxu0 0.0
    %1406 = vmatpush1.msra.mxu0 0.0
    %1407 = vmatprep.subr.mxu0 0.0
    %1408 = vmatpush1.msra.mxu0 0.0
    %1409 = vmatprep.subr.mxu0 0.0
    %1410 = vmatpush1.msra.mxu0 0.0
    %1411 = vmatprep.subr.mxu0 0.0
    %1412 = vmatpush1.msra.mxu0 0.0
    %1413 = vmatprep.subr.mxu0 0.0
    %1414 = vmatpush1.msra.mxu0 0.0
    %1415 = vmatprep.subr.mxu0 0.0
    %1416 = vmatpush1.msra.mxu0 0.0
    %1417 = vmatprep.subr.mxu0 0.0
    %1418 = vmatpush1.msra.mxu0 0.0
    %1419 = vmatprep.subr.mxu0 0.0
    %1420 = vmatpush1.msra.mxu0 0.0
    %1421 = vmatprep.subr.mxu0 0.0
    %1422 = vmatpush1.msra.mxu0 0.0
    %1423 = vmatprep.subr.mxu0 0.0
    %1424 = vmatpush1.msra.mxu0 0.0
    %1425 = vmatprep.subr.mxu0 0.0
    %1426 = vmatpush1.msra.mxu0 0.0
    %1427 = vmatprep.subr.mxu0 0.0
    %1428 = vmatpush1.msra.mxu0 0.0
    %1429 = vmatprep.subr.mxu0 0.0
    %1430 = vmatpush1.msra.mxu0 0.0
    %1431 = vmatprep.subr.mxu0 0.0
    %1432 = vmatpush1.msra.mxu0 0.0
    %1433 = vmatprep.mubr.f32.mxu0 0.0
    %1434 = vmatmul.mubr.f32.gmra.mrb[0].mxu0 %v1366
    %v1435 = vpop.f32.mrb[0].mxu0
    %v1436 = vadd.f32 %v512, %v1435
    %v1437 = vpop.f32.mrb[0].mxu0
    %v1438 = vadd.f32 %v516, %v1437
    %1439 = vdwg.mxu0
    %1440 = vmatprep.subr.mxu0 0.0
    %1441 = vmatpush1.msra.mxu0 %v459
    %1442 = vmatprep.subr.mxu0 0.0
    %1443 = vmatpush1.msra.mxu0 %v462
    %1444 = vmatprep.subr.mxu0 0.0
    %1445 = vmatpush1.msra.mxu0 %v465
    %1446 = vmatprep.subr.mxu0 0.0
    %1447 = vmatpush1.msra.mxu0 %v468
    %1448 = vmatprep.subr.mxu0 0.0
    %1449 = vmatpush1.msra.mxu0 %v471
    %1450 = vmatprep.subr.mxu0 0.0
    %1451 = vmatpush1.msra.mxu0 %v474
    %1452 = vmatprep.subr.mxu0 0.0
    %1453 = vmatpush1.msra.mxu0 %v477
    %1454 = vmatprep.subr.mxu0 0.0
    %1455 = vmatpush1.msra.mxu0 %v480
    %1456 = vmatprep.subr.mxu0 0.0
    %1457 = vmatpush1.msra.mxu0 %v483
    %1458 = vmatprep.subr.mxu0 0.0
    %1459 = vmatpush1.msra.mxu0 %v486
    %1460 = vmatprep.subr.mxu0 0.0
    %1461 = vmatpush1.msra.mxu0 %v489
    %1462 = vmatprep.subr.mxu0 0.0
    %1463 = vmatpush1.msra.mxu0 %v492
    %1464 = vmatprep.subr.mxu0 0.0
    %1465 = vmatpush1.msra.mxu0 %v495
    %1466 = vmatprep.subr.mxu0 0.0
    %1467 = vmatpush1.msra.mxu0 %v498
    %1468 = vmatprep.subr.mxu0 0.0
    %1469 = vmatpush1.msra.mxu0 %v501
    %1470 = vmatprep.subr.mxu0 0.0
    %1471 = vmatpush1.msra.mxu0 %v504
    %1472 = vmatprep.subr.mxu0 0.0
    %1473 = vmatpush1.msra.mxu0 0.0
    %1474 = vmatprep.subr.mxu0 0.0
    %1475 = vmatpush1.msra.mxu0 0.0
    %1476 = vmatprep.subr.mxu0 0.0
    %1477 = vmatpush1.msra.mxu0 0.0
    %1478 = vmatprep.subr.mxu0 0.0
    %1479 = vmatpush1.msra.mxu0 0.0
    %1480 = vmatprep.subr.mxu0 0.0
    %1481 = vmatpush1.msra.mxu0 0.0
    %1482 = vmatprep.subr.mxu0 0.0
    %1483 = vmatpush1.msra.mxu0 0.0
    %1484 = vmatprep.subr.mxu0 0.0
    %1485 = vmatpush1.msra.mxu0 0.0
    %1486 = vmatprep.subr.mxu0 0.0
    %1487 = vmatpush1.msra.mxu0 0.0
    %1488 = vmatprep.subr.mxu0 0.0
    %1489 = vmatpush1.msra.mxu0 0.0
    %1490 = vmatprep.subr.mxu0 0.0
    %1491 = vmatpush1.msra.mxu0 0.0
    %1492 = vmatprep.subr.mxu0 0.0
    %1493 = vmatpush1.msra.mxu0 0.0
    %1494 = vmatprep.subr.mxu0 0.0
    %1495 = vmatpush1.msra.mxu0 0.0
    %1496 = vmatprep.subr.mxu0 0.0
    %1497 = vmatpush1.msra.mxu0 0.0
    %1498 = vmatprep.subr.mxu0 0.0
    %1499 = vmatpush1.msra.mxu0 0.0
    %1500 = vmatprep.subr.mxu0 0.0
    %1501 = vmatpush1.msra.mxu0 0.0
    %1502 = vmatprep.subr.mxu0 0.0
    %1503 = vmatpush1.msra.mxu0 0.0
    %1504 = vmatprep.mubr.f32.mxu0 0.0
    %1505 = vmatmul.mubr.f32.gmra.mrb[0].mxu0 %v1366
    %v1506 = vpop.f32.mrb[0].mxu0
    %v1507 = vadd.f32 %v520, %v1506
    %v1508 = vpop.f32.mrb[0].mxu0
    %1509 = vdwg.mxu0
    %v1510 = vadd.f32 %v1368, %v1436
    %v1511 = vxor.u32 %v1510, 2147483648
    %v1512 = vmul.f32 %v1511, 1.442695
    %v1513 = vpow.pop %v1512
    %v1514 = vadd.f32 %v1513, 1.0
    %v1515 = vrcp.pop %v1514
    %v1516 = vmul.f32 1.0, %v1515
    %v1518 = vrot.slane %v1368, 2
    %v1520 = vadd.f32 %v1518, %v1438
    %v1521 = vxor.u32 %v1520, 2147483648
    %v1522 = vmul.f32 %v1521, 1.442695
    %v1523 = vpow.pop %v1522
    %v1524 = vadd.f32 %v1523, 1.0
    %v1525 = vrcp.pop %v1524
    %v1526 = vmul.f32 1.0, %v1525
    %v1527 = vmul.f32 %v1516, %v1507
    %v1528 = vrot.slane %v1368, 4
    %v1530 = vadd.f32 %v1528, %v1527
    %v1531 = vtanh.pop %v1530
    %v1532 = vsub.f32 1.0, %v1526
    %v1533 = vmul.f32 %v1532, %v1531
    %v1534 = vmul.f32 %v1526, %v1366
    %v1535 = vadd.f32 %v1533, %v1534
    %s1536 = scalar_lea.vmem [#allocation2], 36
    %v1537 = vld [vmem:[%s1536] sm:$0x3f]
    %1538 = vmatprep.subr.mxu0 %v458
    %1539 = vmatpush1.msra.mxu0 %v457
    %1540 = vmatprep.subr.mxu0 %v461
    %1541 = vmatpush1.msra.mxu0 %v460
    %1542 = vmatprep.subr.mxu0 %v464
    %1543 = vmatpush1.msra.mxu0 %v463
    %1544 = vmatprep.subr.mxu0 %v467
    %1545 = vmatpush1.msra.mxu0 %v466
    %1546 = vmatprep.subr.mxu0 %v470
    %1547 = vmatpush1.msra.mxu0 %v469
    %1548 = vmatprep.subr.mxu0 %v473
    %1549 = vmatpush1.msra.mxu0 %v472
    %1550 = vmatprep.subr.mxu0 %v476
    %1551 = vmatpush1.msra.mxu0 %v475
    %1552 = vmatprep.subr.mxu0 %v479
    %1553 = vmatpush1.msra.mxu0 %v478
    %1554 = vmatprep.subr.mxu0 %v482
    %1555 = vmatpush1.msra.mxu0 %v481
    %1556 = vmatprep.subr.mxu0 %v485
    %1557 = vmatpush1.msra.mxu0 %v484
    %1558 = vmatprep.subr.mxu0 %v488
    %1559 = vmatpush1.msra.mxu0 %v487
    %1560 = vmatprep.subr.mxu0 %v491
    %1561 = vmatpush1.msra.mxu0 %v490
    %1562 = vmatprep.subr.mxu0 %v494
    %1563 = vmatpush1.msra.mxu0 %v493
    %1564 = vmatprep.subr.mxu0 %v497
    %1565 = vmatpush1.msra.mxu0 %v496
    %1566 = vmatprep.subr.mxu0 %v500
    %1567 = vmatpush1.msra.mxu0 %v499
    %1568 = vmatprep.subr.mxu0 %v503
    %1569 = vmatpush1.msra.mxu0 %v502
    %1570 = vmatprep.subr.mxu0 0.0
    %1571 = vmatpush1.msra.mxu0 0.0
    %1572 = vmatprep.subr.mxu0 0.0
    %1573 = vmatpush1.msra.mxu0 0.0
    %1574 = vmatprep.subr.mxu0 0.0
    %1575 = vmatpush1.msra.mxu0 0.0
    %1576 = vmatprep.subr.mxu0 0.0
    %1577 = vmatpush1.msra.mxu0 0.0
    %1578 = vmatprep.subr.mxu0 0.0
    %1579 = vmatpush1.msra.mxu0 0.0
    %1580 = vmatprep.subr.mxu0 0.0
    %1581 = vmatpush1.msra.mxu0 0.0
    %1582 = vmatprep.subr.mxu0 0.0
    %1583 = vmatpush1.msra.mxu0 0.0
    %1584 = vmatprep.subr.mxu0 0.0
    %1585 = vmatpush1.msra.mxu0 0.0
    %1586 = vmatprep.subr.mxu0 0.0
    %1587 = vmatpush1.msra.mxu0 0.0
    %1588 = vmatprep.subr.mxu0 0.0
    %1589 = vmatpush1.msra.mxu0 0.0
    %1590 = vmatprep.subr.mxu0 0.0
    %1591 = vmatpush1.msra.mxu0 0.0
    %1592 = vmatprep.subr.mxu0 0.0
    %1593 = vmatpush1.msra.mxu0 0.0
    %1594 = vmatprep.subr.mxu0 0.0
    %1595 = vmatpush1.msra.mxu0 0.0
    %1596 = vmatprep.subr.mxu0 0.0
    %1597 = vmatpush1.msra.mxu0 0.0
    %1598 = vmatprep.subr.mxu0 0.0
    %1599 = vmatpush1.msra.mxu0 0.0
    %1600 = vmatprep.subr.mxu0 0.0
    %1601 = vmatpush1.msra.mxu0 0.0
    %1602 = vmatprep.mubr.f32.mxu0 0.0
    %1603 = vmatmul.mubr.f32.gmra.mrb[0].mxu0 %v1535
    %v1604 = vpop.f32.mrb[0].mxu0
    %v1605 = vadd.f32 %v512, %v1604
    %v1606 = vpop.f32.mrb[0].mxu0
    %v1607 = vadd.f32 %v516, %v1606
    %1608 = vdwg.mxu0
    %1609 = vmatprep.subr.mxu0 0.0
    %1610 = vmatpush1.msra.mxu0 %v459
    %1611 = vmatprep.subr.mxu0 0.0
    %1612 = vmatpush1.msra.mxu0 %v462
    %1613 = vmatprep.subr.mxu0 0.0
    %1614 = vmatpush1.msra.mxu0 %v465
    %1615 = vmatprep.subr.mxu0 0.0
    %1616 = vmatpush1.msra.mxu0 %v468
    %1617 = vmatprep.subr.mxu0 0.0
    %1618 = vmatpush1.msra.mxu0 %v471
    %1619 = vmatprep.subr.mxu0 0.0
    %1620 = vmatpush1.msra.mxu0 %v474
    %1621 = vmatprep.subr.mxu0 0.0
    %1622 = vmatpush1.msra.mxu0 %v477
    %1623 = vmatprep.subr.mxu0 0.0
    %1624 = vmatpush1.msra.mxu0 %v480
    %1625 = vmatprep.subr.mxu0 0.0
    %1626 = vmatpush1.msra.mxu0 %v483
    %1627 = vmatprep.subr.mxu0 0.0
    %1628 = vmatpush1.msra.mxu0 %v486
    %1629 = vmatprep.subr.mxu0 0.0
    %1630 = vmatpush1.msra.mxu0 %v489
    %1631 = vmatprep.subr.mxu0 0.0
    %1632 = vmatpush1.msra.mxu0 %v492
    %1633 = vmatprep.subr.mxu0 0.0
    %1634 = vmatpush1.msra.mxu0 %v495
    %1635 = vmatprep.subr.mxu0 0.0
    %1636 = vmatpush1.msra.mxu0 %v498
    %1637 = vmatprep.subr.mxu0 0.0
    %1638 = vmatpush1.msra.mxu0 %v501
    %1639 = vmatprep.subr.mxu0 0.0
    %1640 = vmatpush1.msra.mxu0 %v504
    %1641 = vmatprep.subr.mxu0 0.0
    %1642 = vmatpush1.msra.mxu0 0.0
    %1643 = vmatprep.subr.mxu0 0.0
    %1644 = vmatpush1.msra.mxu0 0.0
    %1645 = vmatprep.subr.mxu0 0.0
    %1646 = vmatpush1.msra.mxu0 0.0
    %1647 = vmatprep.subr.mxu0 0.0
    %1648 = vmatpush1.msra.mxu0 0.0
    %1649 = vmatprep.subr.mxu0 0.0
    %1650 = vmatpush1.msra.mxu0 0.0
    %1651 = vmatprep.subr.mxu0 0.0
    %1652 = vmatpush1.msra.mxu0 0.0
    %1653 = vmatprep.subr.mxu0 0.0
    %1654 = vmatpush1.msra.mxu0 0.0
    %1655 = vmatprep.subr.mxu0 0.0
    %1656 = vmatpush1.msra.mxu0 0.0
    %1657 = vmatprep.subr.mxu0 0.0
    %1658 = vmatpush1.msra.mxu0 0.0
    %1659 = vmatprep.subr.mxu0 0.0
    %1660 = vmatpush1.msra.mxu0 0.0
    %1661 = vmatprep.subr.mxu0 0.0
    %1662 = vmatpush1.msra.mxu0 0.0
    %1663 = vmatprep.subr.mxu0 0.0
    %1664 = vmatpush1.msra.mxu0 0.0
    %1665 = vmatprep.subr.mxu0 0.0
    %1666 = vmatpush1.msra.mxu0 0.0
    %1667 = vmatprep.subr.mxu0 0.0
    %1668 = vmatpush1.msra.mxu0 0.0
    %1669 = vmatprep.subr.mxu0 0.0
    %1670 = vmatpush1.msra.mxu0 0.0
    %1671 = vmatprep.subr.mxu0 0.0
    %1672 = vmatpush1.msra.mxu0 0.0
    %1673 = vmatprep.mubr.f32.mxu0 0.0
    %1674 = vmatmul.mubr.f32.gmra.mrb[0].mxu0 %v1535
    %v1675 = vpop.f32.mrb[0].mxu0
    %v1676 = vadd.f32 %v520, %v1675
    %v1677 = vpop.f32.mrb[0].mxu0
    %1678 = vdwg.mxu0
    %v1679 = vadd.f32 %v1537, %v1605
    %v1680 = vxor.u32 %v1679, 2147483648
    %v1681 = vmul.f32 %v1680, 1.442695
    %v1682 = vpow.pop %v1681
    %v1683 = vadd.f32 %v1682, 1.0
    %v1684 = vrcp.pop %v1683
    %v1685 = vmul.f32 1.0, %v1684
    %v1687 = vrot.slane %v1537, 2
    %v1689 = vadd.f32 %v1687, %v1607
    %v1690 = vxor.u32 %v1689, 2147483648
    %v1691 = vmul.f32 %v1690, 1.442695
    %v1692 = vpow.pop %v1691
    %v1693 = vadd.f32 %v1692, 1.0
    %v1694 = vrcp.pop %v1693
    %v1695 = vmul.f32 1.0, %v1694
    %v1696 = vmul.f32 %v1685, %v1676
    %v1697 = vrot.slane %v1537, 4
    %v1699 = vadd.f32 %v1697, %v1696
    %v1700 = vtanh.pop %v1699
    %v1701 = vsub.f32 1.0, %v1695
    %v1702 = vmul.f32 %v1701, %v1700
    %v1703 = vmul.f32 %v1695, %v1535
    %v1704 = vadd.f32 %v1702, %v1703
    %s1705 = scalar_lea.vmem [#allocation2], 42
    %v1706 = vld [vmem:[%s1705] sm:$0x3f]
    %1707 = vmatprep.subr.mxu0 %v458
    %1708 = vmatpush1.msra.mxu0 %v457
    %1709 = vmatprep.subr.mxu0 %v461
    %1710 = vmatpush1.msra.mxu0 %v460
    %1711 = vmatprep.subr.mxu0 %v464
    %1712 = vmatpush1.msra.mxu0 %v463
    %1713 = vmatprep.subr.mxu0 %v467
    %1714 = vmatpush1.msra.mxu0 %v466
    %1715 = vmatprep.subr.mxu0 %v470
    %1716 = vmatpush1.msra.mxu0 %v469
    %1717 = vmatprep.subr.mxu0 %v473
    %1718 = vmatpush1.msra.mxu0 %v472
    %1719 = vmatprep.subr.mxu0 %v476
    %1720 = vmatpush1.msra.mxu0 %v475
    %1721 = vmatprep.subr.mxu0 %v479
    %1722 = vmatpush1.msra.mxu0 %v478
    %1723 = vmatprep.subr.mxu0 %v482
    %1724 = vmatpush1.msra.mxu0 %v481
    %1725 = vmatprep.subr.mxu0 %v485
    %1726 = vmatpush1.msra.mxu0 %v484
    %1727 = vmatprep.subr.mxu0 %v488
    %1728 = vmatpush1.msra.mxu0 %v487
    %1729 = vmatprep.subr.mxu0 %v491
    %1730 = vmatpush1.msra.mxu0 %v490
    %1731 = vmatprep.subr.mxu0 %v494
    %1732 = vmatpush1.msra.mxu0 %v493
    %1733 = vmatprep.subr.mxu0 %v497
    %1734 = vmatpush1.msra.mxu0 %v496
    %1735 = vmatprep.subr.mxu0 %v500
    %1736 = vmatpush1.msra.mxu0 %v499
    %1737 = vmatprep.subr.mxu0 %v503
    %1738 = vmatpush1.msra.mxu0 %v502
    %1739 = vmatprep.subr.mxu0 0.0
    %1740 = vmatpush1.msra.mxu0 0.0
    %1741 = vmatprep.subr.mxu0 0.0
    %1742 = vmatpush1.msra.mxu0 0.0
    %1743 = vmatprep.subr.mxu0 0.0
    %1744 = vmatpush1.msra.mxu0 0.0
    %1745 = vmatprep.subr.mxu0 0.0
    %1746 = vmatpush1.msra.mxu0 0.0
    %1747 = vmatprep.subr.mxu0 0.0
    %1748 = vmatpush1.msra.mxu0 0.0
    %1749 = vmatprep.subr.mxu0 0.0
    %1750 = vmatpush1.msra.mxu0 0.0
    %1751 = vmatprep.subr.mxu0 0.0
    %1752 = vmatpush1.msra.mxu0 0.0
    %1753 = vmatprep.subr.mxu0 0.0
    %1754 = vmatpush1.msra.mxu0 0.0
    %1755 = vmatprep.subr.mxu0 0.0
    %1756 = vmatpush1.msra.mxu0 0.0
    %1757 = vmatprep.subr.mxu0 0.0
    %1758 = vmatpush1.msra.mxu0 0.0
    %1759 = vmatprep.subr.mxu0 0.0
    %1760 = vmatpush1.msra.mxu0 0.0
    %1761 = vmatprep.subr.mxu0 0.0
    %1762 = vmatpush1.msra.mxu0 0.0
    %1763 = vmatprep.subr.mxu0 0.0
    %1764 = vmatpush1.msra.mxu0 0.0
    %1765 = vmatprep.subr.mxu0 0.0
    %1766 = vmatpush1.msra.mxu0 0.0
    %1767 = vmatprep.subr.mxu0 0.0
    %1768 = vmatpush1.msra.mxu0 0.0
    %1769 = vmatprep.subr.mxu0 0.0
    %1770 = vmatpush1.msra.mxu0 0.0
    %1771 = vmatprep.mubr.f32.mxu0 0.0
    %1772 = vmatmul.mubr.f32.gmra.mrb[0].mxu0 %v1704
    %v1773 = vpop.f32.mrb[0].mxu0
    %v1774 = vadd.f32 %v512, %v1773
    %v1775 = vpop.f32.mrb[0].mxu0
    %v1776 = vadd.f32 %v516, %v1775
    %1777 = vdwg.mxu0
    %1778 = vmatprep.subr.mxu0 0.0
    %1779 = vmatpush1.msra.mxu0 %v459
    %1780 = vmatprep.subr.mxu0 0.0
    %1781 = vmatpush1.msra.mxu0 %v462
    %1782 = vmatprep.subr.mxu0 0.0
    %1783 = vmatpush1.msra.mxu0 %v465
    %1784 = vmatprep.subr.mxu0 0.0
    %1785 = vmatpush1.msra.mxu0 %v468
    %1786 = vmatprep.subr.mxu0 0.0
    %1787 = vmatpush1.msra.mxu0 %v471
    %1788 = vmatprep.subr.mxu0 0.0
    %1789 = vmatpush1.msra.mxu0 %v474
    %1790 = vmatprep.subr.mxu0 0.0
    %1791 = vmatpush1.msra.mxu0 %v477
    %1792 = vmatprep.subr.mxu0 0.0
    %1793 = vmatpush1.msra.mxu0 %v480
    %1794 = vmatprep.subr.mxu0 0.0
    %1795 = vmatpush1.msra.mxu0 %v483
    %1796 = vmatprep.subr.mxu0 0.0
    %1797 = vmatpush1.msra.mxu0 %v486
    %1798 = vmatprep.subr.mxu0 0.0
    %1799 = vmatpush1.msra.mxu0 %v489
    %1800 = vmatprep.subr.mxu0 0.0
    %1801 = vmatpush1.msra.mxu0 %v492
    %1802 = vmatprep.subr.mxu0 0.0
    %1803 = vmatpush1.msra.mxu0 %v495
    %1804 = vmatprep.subr.mxu0 0.0
    %1805 = vmatpush1.msra.mxu0 %v498
    %1806 = vmatprep.subr.mxu0 0.0
    %1807 = vmatpush1.msra.mxu0 %v501
    %1808 = vmatprep.subr.mxu0 0.0
    %1809 = vmatpush1.msra.mxu0 %v504
    %1810 = vmatprep.subr.mxu0 0.0
    %1811 = vmatpush1.msra.mxu0 0.0
    %1812 = vmatprep.subr.mxu0 0.0
    %1813 = vmatpush1.msra.mxu0 0.0
    %1814 = vmatprep.subr.mxu0 0.0
    %1815 = vmatpush1.msra.mxu0 0.0
    %1816 = vmatprep.subr.mxu0 0.0
    %1817 = vmatpush1.msra.mxu0 0.0
    %1818 = vmatprep.subr.mxu0 0.0
    %1819 = vmatpush1.msra.mxu0 0.0
    %1820 = vmatprep.subr.mxu0 0.0
    %1821 = vmatpush1.msra.mxu0 0.0
    %1822 = vmatprep.subr.mxu0 0.0
    %1823 = vmatpush1.msra.mxu0 0.0
    %1824 = vmatprep.subr.mxu0 0.0
    %1825 = vmatpush1.msra.mxu0 0.0
    %1826 = vmatprep.subr.mxu0 0.0
    %1827 = vmatpush1.msra.mxu0 0.0
    %1828 = vmatprep.subr.mxu0 0.0
    %1829 = vmatpush1.msra.mxu0 0.0
    %1830 = vmatprep.subr.mxu0 0.0
    %1831 = vmatpush1.msra.mxu0 0.0
    %1832 = vmatprep.subr.mxu0 0.0
    %1833 = vmatpush1.msra.mxu0 0.0
    %1834 = vmatprep.subr.mxu0 0.0
    %1835 = vmatpush1.msra.mxu0 0.0
    %1836 = vmatprep.subr.mxu0 0.0
    %1837 = vmatpush1.msra.mxu0 0.0
    %1838 = vmatprep.subr.mxu0 0.0
    %1839 = vmatpush1.msra.mxu0 0.0
    %1840 = vmatprep.subr.mxu0 0.0
    %1841 = vmatpush1.msra.mxu0 0.0
    %1842 = vmatprep.mubr.f32.mxu0 0.0
    %1843 = vmatmul.mubr.f32.gmra.mrb[0].mxu0 %v1704
    %v1844 = vpop.f32.mrb[0].mxu0
    %v1845 = vadd.f32 %v520, %v1844
    %v1846 = vpop.f32.mrb[0].mxu0
    %1847 = vdwg.mxu0
    %v1848 = vadd.f32 %v1706, %v1774
    %v1849 = vxor.u32 %v1848, 2147483648
    %v1850 = vmul.f32 %v1849, 1.442695
    %v1851 = vpow.pop %v1850
    %v1852 = vadd.f32 %v1851, 1.0
    %v1853 = vrcp.pop %v1852
    %v1854 = vmul.f32 1.0, %v1853
    %v1856 = vrot.slane %v1706, 2
    %v1858 = vadd.f32 %v1856, %v1776
    %v1859 = vxor.u32 %v1858, 2147483648
    %v1860 = vmul.f32 %v1859, 1.442695
    %v1861 = vpow.pop %v1860
    %v1862 = vadd.f32 %v1861, 1.0
    %v1863 = vrcp.pop %v1862
    %v1864 = vmul.f32 1.0, %v1863
    %v1865 = vmul.f32 %v1854, %v1845
    %v1866 = vrot.slane %v1706, 4
    %v1868 = vadd.f32 %v1866, %v1865
    %v1869 = vtanh.pop %v1868
    %v1870 = vsub.f32 1.0, %v1864
    %v1871 = vmul.f32 %v1870, %v1869
    %v1872 = vmul.f32 %v1864, %v1704
    %v1873 = vadd.f32 %v1871, %v1872
    %v1874 = vld [vmem:[#allocation11] sm:$0xff]
    %v1875 = vld [vmem:[#allocation11 + $0x8] sm:$0xff]
    %v1876 = vld [vmem:[#allocation11 + $0x10] sm:$0xff]
    %v1877 = vld [vmem:[#allocation11 + $0x18] sm:$0xff]
    %v1878 = vld [vmem:[#allocation11 + $0x20] sm:$0xff]
    %v1879 = vld [vmem:[#allocation11 + $0x28] sm:$0xff]
    %v1880 = vld [vmem:[#allocation11 + $0x30] sm:$0xff]
    %v1881 = vld [vmem:[#allocation11 + $0x38] sm:$0xff]
    %v1882 = vld [vmem:[#allocation11 + $0x40] sm:$0xff]
    %v1883 = vld [vmem:[#allocation11 + $0x48] sm:$0xff]
    %v1884 = vld [vmem:[#allocation11 + $0x50] sm:$0xff]
    %v1885 = vld [vmem:[#allocation11 + $0x58] sm:$0xff]
    %v1886 = vld [vmem:[#allocation11 + $0x60] sm:$0xff]
    %v1887 = vld [vmem:[#allocation11 + $0x68] sm:$0xff]
    %v1888 = vld [vmem:[#allocation11 + $0x70] sm:$0xff]
    %v1889 = vld [vmem:[#allocation11 + $0x78] sm:$0xff]
    %v1890 = vld [vmem:[%s7] sm:$0x1]
    %v1892 = vlaneseq
    %v1893 = vshrl.u32 %v1892, 7
    %v1894 = vsub.s32 0, %v1893
    %v1895 = vrot.slane %v1890, %v1894
    %1897 = vmatprep.subr.mxu0 0.0
    %1898 = vmatpush1.msra.mxu0 %v1874
    %1899 = vmatprep.subr.mxu0 0.0
    %1900 = vmatpush1.msra.mxu0 %v1875
    %1901 = vmatprep.subr.mxu0 0.0
    %1902 = vmatpush1.msra.mxu0 %v1876
    %1903 = vmatprep.subr.mxu0 0.0
    %1904 = vmatpush1.msra.mxu0 %v1877
    %1905 = vmatprep.subr.mxu0 0.0
    %1906 = vmatpush1.msra.mxu0 %v1878
    %1907 = vmatprep.subr.mxu0 0.0
    %1908 = vmatpush1.msra.mxu0 %v1879
    %1909 = vmatprep.subr.mxu0 0.0
    %1910 = vmatpush1.msra.mxu0 %v1880
    %1911 = vmatprep.subr.mxu0 0.0
    %1912 = vmatpush1.msra.mxu0 %v1881
    %1913 = vmatprep.subr.mxu0 0.0
    %1914 = vmatpush1.msra.mxu0 %v1882
    %1915 = vmatprep.subr.mxu0 0.0
    %1916 = vmatpush1.msra.mxu0 %v1883
    %1917 = vmatprep.subr.mxu0 0.0
    %1918 = vmatpush1.msra.mxu0 %v1884
    %1919 = vmatprep.subr.mxu0 0.0
    %1920 = vmatpush1.msra.mxu0 %v1885
    %1921 = vmatprep.subr.mxu0 0.0
    %1922 = vmatpush1.msra.mxu0 %v1886
    %1923 = vmatprep.subr.mxu0 0.0
    %1924 = vmatpush1.msra.mxu0 %v1887
    %1925 = vmatprep.subr.mxu0 0.0
    %1926 = vmatpush1.msra.mxu0 %v1888
    %1927 = vmatprep.subr.mxu0 0.0
    %1928 = vmatpush1.msra.mxu0 %v1889
    %1929 = vmatprep.subr.mxu0 0.0
    %1930 = vmatpush1.msra.mxu0 0.0
    %1931 = vmatprep.subr.mxu0 0.0
    %1932 = vmatpush1.msra.mxu0 0.0
    %1933 = vmatprep.subr.mxu0 0.0
    %1934 = vmatpush1.msra.mxu0 0.0
    %1935 = vmatprep.subr.mxu0 0.0
    %1936 = vmatpush1.msra.mxu0 0.0
    %1937 = vmatprep.subr.mxu0 0.0
    %1938 = vmatpush1.msra.mxu0 0.0
    %1939 = vmatprep.subr.mxu0 0.0
    %1940 = vmatpush1.msra.mxu0 0.0
    %1941 = vmatprep.subr.mxu0 0.0
    %1942 = vmatpush1.msra.mxu0 0.0
    %1943 = vmatprep.subr.mxu0 0.0
    %1944 = vmatpush1.msra.mxu0 0.0
    %1945 = vmatprep.subr.mxu0 0.0
    %1946 = vmatpush1.msra.mxu0 0.0
    %1947 = vmatprep.subr.mxu0 0.0
    %1948 = vmatpush1.msra.mxu0 0.0
    %1949 = vmatprep.subr.mxu0 0.0
    %1950 = vmatpush1.msra.mxu0 0.0
    %1951 = vmatprep.subr.mxu0 0.0
    %1952 = vmatpush1.msra.mxu0 0.0
    %1953 = vmatprep.subr.mxu0 0.0
    %1954 = vmatpush1.msra.mxu0 0.0
    %1955 = vmatprep.subr.mxu0 0.0
    %1956 = vmatpush1.msra.mxu0 0.0
    %1957 = vmatprep.subr.mxu0 0.0
    %1958 = vmatpush1.msra.mxu0 0.0
    %1959 = vmatprep.subr.mxu0 0.0
    %1960 = vmatpush1.msra.mxu0 0.0
    %1961 = vmatprep.mubr.f32.mxu0 0.0
    %1962 = vmatmul.mubr.f32.gmra.mrb[0].mxu0 %v1873
    %v1963 = vpop.f32.mrb[0].mxu0
    %v1964 = vadd.f32 %v1895, %v1963
    %v1965 = vpop.f32.mrb[0].mxu0
    %1966 = vdwg.mxu0
    %vm1967 = vcmask 1041408
    %v1968 = vsel %vm1967, %v1964, -inf
    %1969 = vmax.xlane.f32.xlu0 %v1968
    %v1970 = vpop.xlane.xlu0 %1969
    %v1971 = vsub.f32 %v1964, %v1970
    %v1972 = vmul.f32 %v1971, 1.442695
    %v1973 = vpow.pop %v1972
    %v1974 = vsel %vm1967, %v1973, 0.0
    %1975 = vadd.xlane.f32.xlu0 %v1974
    %v1976 = vpop.xlane.xlu0 %1975
    %v1977 = vlog2.pop %v1976
    %v1978 = vmul.f32 %v1977, 0.6931472
    %v1979 = vadd.f32 %v1970, %v1978
    %v1980 = vsub.f32 %v1964, %v1979
    %1981 = vst [vmem:[#allocation12] sm:$0x3] %v1980
    // Predicated region
    $region54: #{tpu_custom_call.1} parent=1 // pred_check
      _
    $region55: #{tpu_custom_call.1} parent=1 // pred_check_branch
      %1983 = sbr.rel (0) target = $region57
    $region56: #{tpu_custom_call.1} parent=1 // pred_region
      %s1985 = ssub.s32 32, 32
      %1986 = vsyncadd [#allocation5], %s1985
      %s1988 = sshll.u32 [#allocation12], 4
      %s1989 = int_to_ptr.vmem [resolvable:$true] %s1988
      %1991 = dma.vmem_to_hbm [thread:$0]  %s1989, 32, %s8, [#allocation5]
    $region57: #{tpu_custom_call.1} parent=1 // pred_fallthru
      _
    // Predicated region
    $region58: #{tpu_custom_call.1} parent=1 // pred_check
      _
    $region59: #{tpu_custom_call.1} parent=1 // pred_check_branch
      %1993 = sbr.rel (0) target = $region61
    $region60: #{tpu_custom_call.1} parent=1 // pred_region
      %1994 = dma.done [#allocation5], 32
    $region61: #{tpu_custom_call.1} parent=1 // pred_fallthru
      _
    %1995 = vsyncpa [#allocation4], 1
    %1996 = vsyncpa [#allocation7], 1
    %1997 = vsyncpa [#allocation10], 1
    %1998 = vsyncpa [#allocation5], 1

</llo_original>
